<compile_context>
chip_gen: v7x
topology: tpu7x:2x2x1
jax: 0.10.0
libtpu: 0.0.40
codegen_flags: <defaults>
</compile_context>

<pallas_src>
import functools

import jax
import jax.numpy as jnp
import numpy as np
from jax import lax
from jax.experimental import pallas as pl
from jax.experimental.pallas import tpu as pltpu


def _ssim_kernel(x_ref, y_ref, o_ref, *, c1, c2, img_h):
    """One strip of G whole images, flattened to (R, W) rows with R = G*img_h.

    x_ref / y_ref: (R, W) inputs in the source dtype.
    o_ref:         (R, W) SSIM loss map in the source dtype.
    """
    R, W = o_ref.shape

    x = x_ref[...].astype(jnp.float32)
    y = y_ref[...].astype(jnp.float32)

    # Per-image reflect-boundary masks (computed once, shared by all 5 stats).
    row = lax.broadcasted_iota(jnp.int32, (R, W), 0) % img_h
    col = lax.broadcasted_iota(jnp.int32, (R, W), 1)
    top = row == 0
    bot = row == img_h - 1
    lft = col == 0
    rgt = col == W - 1

    # 3-tap sums with reflect boundaries.  pltpu.roll runs on the XLU (idle
    # here), so the shifts co-issue with the VALU adds/selects.  Non-negative
    # shifts only (size-1 == shift of -1 under wrap-around semantics).
    def vsum(a):  # vertical (sublane axis)
        up = pltpu.roll(a, 1, 0)        # a[i-1]   (wraps; fixed by selects)
        dn = pltpu.roll(a, R - 1, 0)    # a[i+1]
        return a + jnp.where(top, dn, up) + jnp.where(bot, up, dn)

    def hsum(a):  # horizontal (lane axis)
        le = pltpu.roll(a, 1, 1)        # a[:, j-1]
        ri = pltpu.roll(a, W - 1, 1)    # a[:, j+1]
        return a + jnp.where(lft, ri, le) + jnp.where(rgt, le, ri)

    def box(a):
        return hsum(vsum(a))

    inv9 = jnp.float32(1.0 / 9.0)
    mu_x = box(x) * inv9
    mu_y = box(y) * inv9
    e_xx = box(x * x) * inv9            # products hoisted: 3 muls total
    e_yy = box(y * y) * inv9
    e_xy = box(x * y) * inv9

    mxx = mu_x * mu_x
    myy = mu_y * mu_y
    mxy = mu_x * mu_y
    sigma_x = e_xx - mxx
    sigma_y = e_yy - myy
    sigma_xy = e_xy - mxy

    ssim_n = (2.0 * mxy + c1) * (2.0 * sigma_xy + c2)
    ssim_d = (mxx + myy + c1) * (sigma_x + sigma_y + c2)
    out = (1.0 - ssim_n * pl.reciprocal(ssim_d, approx=True)) * 0.5
    o_ref[...] = jnp.clip(out, 0.0, 1.0).astype(o_ref.dtype)


def _pick_images_per_block(n_imgs, img_h, bytes_per_img, target_bytes):
    """Largest divisor G of n_imgs s.t. the (G*img_h, W) block obeys the
    sublane constraint ((G*img_h) % 8 == 0 or full extent) and stays under
    `target_bytes`; prefers leaving >= 2 grid steps for megacore sharding."""
    divisors = [d for d in range(1, n_imgs + 1) if n_imgs % d == 0]
    valid = [d for d in divisors if (d * img_h) % 8 == 0 or d == n_imgs]
    fitting = [d for d in valid if d * bytes_per_img <= target_bytes]
    if not fitting:
        fitting = [min(valid)]
    multi_step = [d for d in fitting if n_imgs // d >= 2]
    return max(multi_step) if multi_step else max(fitting)


def ssim(x, y, *, c1=0.01 ** 2, c2=0.03 ** 2, target_block_bytes=512 * 1024):
    """Pallas implementation of SSIM.forward for NCHW inputs x, y."""
    assert x.shape == y.shape and x.ndim == 4
    B, C, H, W = x.shape
    assert H >= 2 and W >= 2, "ReflectionPad2d(1) requires H, W >= 2"
    N = B * C

    dtype = x.dtype
    itemsize = jnp.dtype(dtype).itemsize
    G = _pick_images_per_block(N, H, H * W * itemsize, target_block_bytes)
    R = G * H
    grid = (N // G,)

    # Flatten to an (N*H, W) row slab — metadata-only; no pad, no cast in HBM.
    x2 = x.reshape(N * H, W)
    y2 = y.reshape(N * H, W)

    kernel = functools.partial(_ssim_kernel, c1=float(c1), c2=float(c2), img_h=H)
    spec = pl.BlockSpec((R, W), lambda i: (i, 0))

    # VMEM sizing from actual block bytes: 2 inputs x 2 buffers + output x 2
    # buffers + ~20 f32 temporaries of block size, with 2x headroom.
    blk = R * W
    est = (2 * 2 + 2) * blk * itemsize + 20 * blk * 4
    vmem_limit = int(min(max(2 * est, 16 << 20), 48 << 20))

    out = pl.pallas_call(
        kernel,
        out_shape=jax.ShapeDtypeStruct((N * H, W), dtype),
        grid_spec=pltpu.PrefetchScalarGridSpec(
            num_scalar_prefetch=0,
            grid=grid,
            in_specs=[spec, spec],
            out_specs=spec,
        ),
        compiler_params=pltpu.CompilerParams(
            dimension_semantics=("parallel",),   # independent image strips
            vmem_limit_bytes=vmem_limit,
        ),
    )(x2, y2)

    return out.reshape(B, C, H, W)


def _reference_ssim(x, y, c1, c2):
    """NumPy transliteration of the PyTorch forward (ground truth)."""
    x = np.asarray(x, np.float64)
    y = np.asarray(y, np.float64)
    B, C, H, W = x.shape
    xp = np.pad(x, ((0, 0), (0, 0), (1, 1), (1, 1)), mode="reflect")
    yp = np.pad(y, ((0, 0), (0, 0), (1, 1), (1, 1)), mode="reflect")

    def pool(a):
        acc = np.zeros((B, C, H, W), np.float64)
        for di in range(3):
            for dj in range(3):
                acc += a[:, :, di:di + H, dj:dj + W]
        return acc / 9.0

    mu_x = pool(xp)
    mu_y = pool(yp)
    sigma_x = pool(xp * xp) - mu_x ** 2
    sigma_y = pool(yp * yp) - mu_y ** 2
    sigma_xy = pool(xp * yp) - mu_x * mu_y
    ssim_n = (2.0 * mu_x * mu_y + c1) * (2.0 * sigma_xy + c2)
    ssim_d = (mu_x ** 2 + mu_y ** 2 + c1) * (sigma_x + sigma_y + c2)
    return np.clip((1.0 - ssim_n / ssim_d) / 2.0, 0.0, 1.0)


if __name__ == "__main__":
    C1 = 0.01 ** 2
    C2 = 0.03 ** 2

    key = jax.random.PRNGKey(0)
    kx, ky = jax.random.split(key)

    B, C, H, W = 2, 4, 16, 16
    x = jax.random.uniform(kx, (B, C, H, W), dtype=jnp.float32)
    y = jax.random.uniform(ky, (B, C, H, W), dtype=jnp.float32)

    out = jax.block_until_ready(ssim(x, y, c1=C1, c2=C2))

    ref = _reference_ssim(np.asarray(x), np.asarray(y), C1, C2)
    # approx EUP reciprocal contributes <= ~1e-4 abs error on a [0,1] output;
    # any padding / boundary / separability bug would be orders larger.
    np.testing.assert_allclose(np.asarray(out, np.float64), ref,
                               rtol=5e-3, atol=5e-3)

    print("KERNEL_OK")
</pallas_src>

<mosaic_0001>
module attributes {stable_mosaic.version = 11 : i64} {
  func.func @_ssim_kernel(%arg0: i32, %arg1: memref<64x16xf32, #tpu.memory_space<vmem>>, %arg2: memref<64x16xf32, #tpu.memory_space<vmem>>, %arg3: memref<64x16xf32, #tpu.memory_space<vmem>>) attributes {dimension_semantics = [#tpu.dimension_semantics<parallel>], iteration_bounds = array<i64: 2>, scalar_prefetch = 0 : i64, scratch_operands = 0 : i64, tpu.core_type = #tpu.core_type<tc>, window_params = [{transform_indices = @transform_0, window_bounds = array<i64: 64, 16>}, {transform_indices = @transform_1, window_bounds = array<i64: 64, 16>}, {transform_indices = @transform_2, window_bounds = array<i64: 64, 16>}]} {
    %c0 = arith.constant 0 : index
    %c0_0 = arith.constant 0 : index
    %0 = vector.load %arg1[%c0, %c0_0] : memref<64x16xf32, #tpu.memory_space<vmem>>, vector<64x16xf32>
    %c0_1 = arith.constant 0 : index
    %c0_2 = arith.constant 0 : index
    %1 = vector.load %arg2[%c0_1, %c0_2] : memref<64x16xf32, #tpu.memory_space<vmem>>, vector<64x16xf32>
    %2 = tpu.iota {dimensions = array<i32: 0>} : vector<64x16xi32>
    %c16_i32 = arith.constant 16 : i32
    %c0_i32 = arith.constant 0 : i32
    %3 = arith.cmpi eq, %c16_i32, %c0_i32 : i32
    %c1_i32 = arith.constant 1 : i32
    %4 = arith.select %3, %c1_i32, %c16_i32 : i32
    %5 = vector.broadcast %4 : i32 to vector<64x16xi32>
    %6 = arith.remsi %2, %5 : vector<64x16xi32>
    %c0_i32_3 = arith.constant 0 : i32
    %7 = vector.broadcast %c0_i32_3 : i32 to vector<64x16xi32>
    %8 = arith.cmpi ne, %6, %7 : vector<64x16xi32>
    %c0_i32_4 = arith.constant 0 : i32
    %9 = vector.broadcast %c0_i32_4 : i32 to vector<64x16xi32>
    %10 = arith.cmpi slt, %6, %9 : vector<64x16xi32>
    %c0_i32_5 = arith.constant 0 : i32
    %11 = arith.cmpi slt, %4, %c0_i32_5 : i32
    %12 = vector.broadcast %11 : i1 to vector<64x16xi1>
    %13 = vector.broadcast %12 : vector<64x16xi1> to vector<64x16xi1>
    %14 = arith.xori %10, %13 : vector<64x16xi1>
    %15 = arith.andi %14, %8 : vector<64x16xi1>
    %16 = vector.broadcast %4 : i32 to vector<64x16xi32>
    %17 = arith.addi %6, %16 : vector<64x16xi32>
    %18 = arith.select %15, %17, %6 : vector<64x16xi1>, vector<64x16xi32>
    %19 = tpu.iota {dimensions = array<i32: 1>} : vector<64x16xi32>
    %c0_i32_6 = arith.constant 0 : i32
    %20 = vector.broadcast %c0_i32_6 : i32 to vector<64x16xi32>
    %21 = arith.cmpi eq, %18, %20 : vector<64x16xi32>
    %c15_i32 = arith.constant 15 : i32
    %22 = vector.broadcast %c15_i32 : i32 to vector<64x16xi32>
    %23 = arith.cmpi eq, %18, %22 : vector<64x16xi32>
    %c0_i32_7 = arith.constant 0 : i32
    %24 = vector.broadcast %c0_i32_7 : i32 to vector<64x16xi32>
    %25 = arith.cmpi eq, %19, %24 : vector<64x16xi32>
    %c15_i32_8 = arith.constant 15 : i32
    %26 = vector.broadcast %c15_i32_8 : i32 to vector<64x16xi32>
    %27 = arith.cmpi eq, %19, %26 : vector<64x16xi32>
    %c1_i32_9 = arith.constant 1 : i32
    %28 = tpu.dynamic_rotate %0 by %c1_i32_9 dim 0 : vector<64x16xf32>, i32 -> vector<64x16xf32>
    %c63_i32 = arith.constant 63 : i32
    %29 = tpu.dynamic_rotate %0 by %c63_i32 dim 0 : vector<64x16xf32>, i32 -> vector<64x16xf32>
    %30 = arith.select %21, %29, %28 : vector<64x16xi1>, vector<64x16xf32>
    %31 = arith.addf %0, %30 : vector<64x16xf32>
    %32 = arith.select %23, %28, %29 : vector<64x16xi1>, vector<64x16xf32>
    %33 = arith.addf %31, %32 : vector<64x16xf32>
    %c1_i32_10 = arith.constant 1 : i32
    %34 = tpu.dynamic_rotate %33 by %c1_i32_10 dim 1 : vector<64x16xf32>, i32 -> vector<64x16xf32>
    %c15_i32_11 = arith.constant 15 : i32
    %35 = tpu.dynamic_rotate %33 by %c15_i32_11 dim 1 : vector<64x16xf32>, i32 -> vector<64x16xf32>
    %36 = arith.select %25, %35, %34 : vector<64x16xi1>, vector<64x16xf32>
    %37 = arith.addf %33, %36 : vector<64x16xf32>
    %38 = arith.select %27, %34, %35 : vector<64x16xi1>, vector<64x16xf32>
    %39 = arith.addf %37, %38 : vector<64x16xf32>
    %cst = arith.constant 0.111111112 : f32
    %40 = vector.broadcast %cst : f32 to vector<64x16xf32>
    %41 = arith.mulf %39, %40 : vector<64x16xf32>
    %c1_i32_12 = arith.constant 1 : i32
    %42 = tpu.dynamic_rotate %1 by %c1_i32_12 dim 0 : vector<64x16xf32>, i32 -> vector<64x16xf32>
    %c63_i32_13 = arith.constant 63 : i32
    %43 = tpu.dynamic_rotate %1 by %c63_i32_13 dim 0 : vector<64x16xf32>, i32 -> vector<64x16xf32>
    %44 = arith.select %21, %43, %42 : vector<64x16xi1>, vector<64x16xf32>
    %45 = arith.addf %1, %44 : vector<64x16xf32>
    %46 = arith.select %23, %42, %43 : vector<64x16xi1>, vector<64x16xf32>
    %47 = arith.addf %45, %46 : vector<64x16xf32>
    %c1_i32_14 = arith.constant 1 : i32
    %48 = tpu.dynamic_rotate %47 by %c1_i32_14 dim 1 : vector<64x16xf32>, i32 -> vector<64x16xf32>
    %c15_i32_15 = arith.constant 15 : i32
    %49 = tpu.dynamic_rotate %47 by %c15_i32_15 dim 1 : vector<64x16xf32>, i32 -> vector<64x16xf32>
    %50 = arith.select %25, %49, %48 : vector<64x16xi1>, vector<64x16xf32>
    %51 = arith.addf %47, %50 : vector<64x16xf32>
    %52 = arith.select %27, %48, %49 : vector<64x16xi1>, vector<64x16xf32>
    %53 = arith.addf %51, %52 : vector<64x16xf32>
    %cst_16 = arith.constant 0.111111112 : f32
    %54 = vector.broadcast %cst_16 : f32 to vector<64x16xf32>
    %55 = arith.mulf %53, %54 : vector<64x16xf32>
    %56 = arith.mulf %0, %0 : vector<64x16xf32>
    %c1_i32_17 = arith.constant 1 : i32
    %57 = tpu.dynamic_rotate %56 by %c1_i32_17 dim 0 : vector<64x16xf32>, i32 -> vector<64x16xf32>
    %c63_i32_18 = arith.constant 63 : i32
    %58 = tpu.dynamic_rotate %56 by %c63_i32_18 dim 0 : vector<64x16xf32>, i32 -> vector<64x16xf32>
    %59 = arith.select %21, %58, %57 : vector<64x16xi1>, vector<64x16xf32>
    %60 = arith.addf %56, %59 : vector<64x16xf32>
    %61 = arith.select %23, %57, %58 : vector<64x16xi1>, vector<64x16xf32>
    %62 = arith.addf %60, %61 : vector<64x16xf32>
    %c1_i32_19 = arith.constant 1 : i32
    %63 = tpu.dynamic_rotate %62 by %c1_i32_19 dim 1 : vector<64x16xf32>, i32 -> vector<64x16xf32>
    %c15_i32_20 = arith.constant 15 : i32
    %64 = tpu.dynamic_rotate %62 by %c15_i32_20 dim 1 : vector<64x16xf32>, i32 -> vector<64x16xf32>
    %65 = arith.select %25, %64, %63 : vector<64x16xi1>, vector<64x16xf32>
    %66 = arith.addf %62, %65 : vector<64x16xf32>
    %67 = arith.select %27, %63, %64 : vector<64x16xi1>, vector<64x16xf32>
    %68 = arith.addf %66, %67 : vector<64x16xf32>
    %cst_21 = arith.constant 0.111111112 : f32
    %69 = vector.broadcast %cst_21 : f32 to vector<64x16xf32>
    %70 = arith.mulf %68, %69 : vector<64x16xf32>
    %71 = arith.mulf %1, %1 : vector<64x16xf32>
    %c1_i32_22 = arith.constant 1 : i32
    %72 = tpu.dynamic_rotate %71 by %c1_i32_22 dim 0 : vector<64x16xf32>, i32 -> vector<64x16xf32>
    %c63_i32_23 = arith.constant 63 : i32
    %73 = tpu.dynamic_rotate %71 by %c63_i32_23 dim 0 : vector<64x16xf32>, i32 -> vector<64x16xf32>
    %74 = arith.select %21, %73, %72 : vector<64x16xi1>, vector<64x16xf32>
    %75 = arith.addf %71, %74 : vector<64x16xf32>
    %76 = arith.select %23, %72, %73 : vector<64x16xi1>, vector<64x16xf32>
    %77 = arith.addf %75, %76 : vector<64x16xf32>
    %c1_i32_24 = arith.constant 1 : i32
    %78 = tpu.dynamic_rotate %77 by %c1_i32_24 dim 1 : vector<64x16xf32>, i32 -> vector<64x16xf32>
    %c15_i32_25 = arith.constant 15 : i32
    %79 = tpu.dynamic_rotate %77 by %c15_i32_25 dim 1 : vector<64x16xf32>, i32 -> vector<64x16xf32>
    %80 = arith.select %25, %79, %78 : vector<64x16xi1>, vector<64x16xf32>
    %81 = arith.addf %77, %80 : vector<64x16xf32>
    %82 = arith.select %27, %78, %79 : vector<64x16xi1>, vector<64x16xf32>
    %83 = arith.addf %81, %82 : vector<64x16xf32>
    %cst_26 = arith.constant 0.111111112 : f32
    %84 = vector.broadcast %cst_26 : f32 to vector<64x16xf32>
    %85 = arith.mulf %83, %84 : vector<64x16xf32>
    %86 = arith.mulf %0, %1 : vector<64x16xf32>
    %c1_i32_27 = arith.constant 1 : i32
    %87 = tpu.dynamic_rotate %86 by %c1_i32_27 dim 0 : vector<64x16xf32>, i32 -> vector<64x16xf32>
    %c63_i32_28 = arith.constant 63 : i32
    %88 = tpu.dynamic_rotate %86 by %c63_i32_28 dim 0 : vector<64x16xf32>, i32 -> vector<64x16xf32>
    %89 = arith.select %21, %88, %87 : vector<64x16xi1>, vector<64x16xf32>
    %90 = arith.addf %86, %89 : vector<64x16xf32>
    %91 = arith.select %23, %87, %88 : vector<64x16xi1>, vector<64x16xf32>
    %92 = arith.addf %90, %91 : vector<64x16xf32>
    %c1_i32_29 = arith.constant 1 : i32
    %93 = tpu.dynamic_rotate %92 by %c1_i32_29 dim 1 : vector<64x16xf32>, i32 -> vector<64x16xf32>
    %c15_i32_30 = arith.constant 15 : i32
    %94 = tpu.dynamic_rotate %92 by %c15_i32_30 dim 1 : vector<64x16xf32>, i32 -> vector<64x16xf32>
    %95 = arith.select %25, %94, %93 : vector<64x16xi1>, vector<64x16xf32>
    %96 = arith.addf %92, %95 : vector<64x16xf32>
    %97 = arith.select %27, %93, %94 : vector<64x16xi1>, vector<64x16xf32>
    %98 = arith.addf %96, %97 : vector<64x16xf32>
    %cst_31 = arith.constant 0.111111112 : f32
    %99 = vector.broadcast %cst_31 : f32 to vector<64x16xf32>
    %100 = arith.mulf %98, %99 : vector<64x16xf32>
    %101 = arith.mulf %41, %41 : vector<64x16xf32>
    %102 = arith.mulf %55, %55 : vector<64x16xf32>
    %103 = arith.mulf %41, %55 : vector<64x16xf32>
    %104 = arith.subf %70, %101 : vector<64x16xf32>
    %105 = arith.subf %85, %102 : vector<64x16xf32>
    %106 = arith.subf %100, %103 : vector<64x16xf32>
    %cst_32 = arith.constant 2.000000e+00 : f32
    %107 = vector.broadcast %cst_32 : f32 to vector<64x16xf32>
    %108 = arith.mulf %107, %103 : vector<64x16xf32>
    %cst_33 = arith.constant 9.99999974E-5 : f32
    %109 = vector.broadcast %cst_33 : f32 to vector<64x16xf32>
    %110 = arith.addf %108, %109 : vector<64x16xf32>
    %cst_34 = arith.constant 2.000000e+00 : f32
    %111 = vector.broadcast %cst_34 : f32 to vector<64x16xf32>
    %112 = arith.mulf %111, %106 : vector<64x16xf32>
    %cst_35 = arith.constant 8.99999984E-4 : f32
    %113 = vector.broadcast %cst_35 : f32 to vector<64x16xf32>
    %114 = arith.addf %112, %113 : vector<64x16xf32>
    %115 = arith.mulf %110, %114 : vector<64x16xf32>
    %116 = arith.addf %101, %102 : vector<64x16xf32>
    %cst_36 = arith.constant 9.99999974E-5 : f32
    %117 = vector.broadcast %cst_36 : f32 to vector<64x16xf32>
    %118 = arith.addf %116, %117 : vector<64x16xf32>
    %119 = arith.addf %104, %105 : vector<64x16xf32>
    %cst_37 = arith.constant 8.99999984E-4 : f32
    %120 = vector.broadcast %cst_37 : f32 to vector<64x16xf32>
    %121 = arith.addf %119, %120 : vector<64x16xf32>
    %122 = arith.mulf %118, %121 : vector<64x16xf32>
    %123 = tpu.reciprocal %122 {approx = true} : vector<64x16xf32> -> vector<64x16xf32>
    %124 = arith.mulf %115, %123 : vector<64x16xf32>
    %cst_38 = arith.constant 1.000000e+00 : f32
    %125 = vector.broadcast %cst_38 : f32 to vector<64x16xf32>
    %126 = arith.subf %125, %124 : vector<64x16xf32>
    %cst_39 = arith.constant 5.000000e-01 : f32
    %127 = vector.broadcast %cst_39 : f32 to vector<64x16xf32>
    %128 = arith.mulf %126, %127 : vector<64x16xf32>
    %cst_40 = arith.constant 0.000000e+00 : f32
    %cst_41 = arith.constant 1.000000e+00 : f32
    %129 = vector.broadcast %cst_40 : f32 to vector<64x16xf32>
    %130 = arith.maximumf %129, %128 : vector<64x16xf32>
    %131 = vector.broadcast %cst_41 : f32 to vector<64x16xf32>
    %132 = arith.minimumf %131, %130 : vector<64x16xf32>
    %c0_42 = arith.constant 0 : index
    %c0_43 = arith.constant 0 : index
    %133 = vector.load %arg3[%c0_42, %c0_43] : memref<64x16xf32, #tpu.memory_space<vmem>>, vector<64x16xf32>
    tpu.vector_store %arg3[%c0_42, %c0_43], %132 {strides = array<i32>} : memref<64x16xf32, #tpu.memory_space<vmem>>, vector<64x16xf32>,
    return
  }
  func.func @transform_0(%arg0: i32) -> (i32, i32) {
    %c0_i32 = arith.constant 0 : i32
    %c0_i32_0 = arith.constant 0 : i32
    return %arg0, %c0_i32 : i32, i32
  }
  func.func @transform_1(%arg0: i32) -> (i32, i32) {
    %c0_i32 = arith.constant 0 : i32
    %c0_i32_0 = arith.constant 0 : i32
    return %arg0, %c0_i32 : i32, i32
  }
  func.func @transform_2(%arg0: i32) -> (i32, i32) {
    %c0_i32 = arith.constant 0 : i32
    %c0_i32_0 = arith.constant 0 : i32
    return %arg0, %c0_i32 : i32, i32
  }
}

</mosaic_0001>

<llo_original>
// kernel: tpu_custom_call.1
$region0: #{tpu_custom_call.1}
  #allocation0 [shape = 'u32[]', space=smem, size = 0x4, offset = 0x4, fixed_abs, tag = 'smem constant byte address 0x4 - core index']
  #allocation1 [shape = 'u32[144,128]{1,0:T(1,128)}', space=vmem, size = 0x12000, scoped, tag = 'internal scratch']
  %s0 = inlined_call_operand.vmem [shape: f32[128,16], index: 0, kind: input, shape index: {}]
  %s1 = inlined_call_operand.vmem [shape: f32[128,16], index: 1, kind: input, shape index: {}]
  %s2 = inlined_call_operand.vmem [shape: f32[128,16], index: 2, kind: output, shape index: {}]
  %s3 = sld [smem:[#allocation0]]
  $region41: #{tpu_custom_call.1} parent=0
    _
  %s5 = ssub.s32 1, %s3
  %s6 = scalar_select 0, %s5, %s3
  loop: start=0, step=1, limit=4
  $region2: #{tpu_custom_call.1} parent=0 // loop_pre_header
    _
  $region3: #{tpu_custom_call.1} parent=0 // loop_header
    %s8 = sphi 0, %s12
    %p9 = scmp.ge.s32.totalorder %s8, 4
    %s18 = sphi 0, %s20
    %s21 = sphi 0, %s18
    %s22 = sphi 0, %s21
    %s38 = sphi 0, %s22
    %s44 = sphi 0, %s46
    %s47 = sphi 0, %s44
    %s48 = sphi 0, %s47
    %s64 = sphi 0, %s48
    %s70 = sphi 0, %s72
    %s73 = sphi 0, %s70
    %s74 = sphi 0, %s73
    %s90 = sphi 0, %s74
  $region4: #{tpu_custom_call.1} parent=0 // loop_header_branch
    %11 = sbr.rel (%p9) target = $region8
  $region5: #{tpu_custom_call.1} parent=0 // loop_body
    %s13 = ssub.s32 %s8, 1
    %s14 = ssub.s32 %s8, 2
    %s15 = sadd.s32 %s8, 1
    %s16 = ssub.s32 %s8, %s15
    %p17 = scmp.eq.s32.totalorder %s16, 0
    %s19 = sadd.s32 %s18, 1
    %s20 = scalar_select %p17, %s18, %s19
    %p23 = pneg %p17
    %p24 = scmp.eq.s32.totalorder %s8, 1
    %p25 = por %p23, %p24
    %p26 = scmp.ne.s32.totalorder %s18, %s21
    %p27 = scmp.eq.s32.totalorder %s8, 0
    %p28 = por %p26, %p27
    %p29 = scmp.ne.s32.totalorder %s18, %s21
    %p30 = scmp.eq.s32.totalorder %s13, 1
    %p31 = por %p29, %p30
    %p32 = scmp.ne.s32.totalorder %s21, %s22
    %p33 = scmp.eq.s32.totalorder %s13, 0
    %p34 = por %p32, %p33
    %p35 = scmp.ne.s32.totalorder %s21, %s22
    %p36 = scmp.eq.s32.totalorder %s14, 1
    %p37 = por %p35, %p36
    %p39 = scmp.ne.s32.totalorder %s22, %s38
    %p40 = scmp.eq.s32.totalorder %s14, 0
    %p41 = por %p39, %p40
    %s42 = ssub.s32 %s8, %s15
    %p43 = scmp.eq.s32.totalorder %s42, 0
    %s45 = sadd.s32 %s44, 1
    %s46 = scalar_select %p43, %s44, %s45
    %p49 = pneg %p43
    %p50 = scmp.eq.s32.totalorder %s8, 1
    %p51 = por %p49, %p50
    %p52 = scmp.ne.s32.totalorder %s44, %s47
    %p53 = scmp.eq.s32.totalorder %s8, 0
    %p54 = por %p52, %p53
    %p55 = scmp.ne.s32.totalorder %s44, %s47
    %p56 = scmp.eq.s32.totalorder %s13, 1
    %p57 = por %p55, %p56
    %p58 = scmp.ne.s32.totalorder %s47, %s48
    %p59 = scmp.eq.s32.totalorder %s13, 0
    %p60 = por %p58, %p59
    %p61 = scmp.ne.s32.totalorder %s47, %s48
    %p62 = scmp.eq.s32.totalorder %s14, 1
    %p63 = por %p61, %p62
    %p65 = scmp.ne.s32.totalorder %s48, %s64
    %p66 = scmp.eq.s32.totalorder %s14, 0
    %p67 = por %p65, %p66
    %s68 = ssub.s32 %s8, %s15
    %p69 = scmp.eq.s32.totalorder %s68, 0
    %s71 = sadd.s32 %s70, 1
    %s72 = scalar_select %p69, %s70, %s71
    %p75 = pneg %p69
    %p76 = scmp.eq.s32.totalorder %s8, 1
    %p77 = por %p75, %p76
    %p78 = scmp.ne.s32.totalorder %s70, %s73
    %p79 = scmp.eq.s32.totalorder %s8, 0
    %p80 = por %p78, %p79
    %p81 = scmp.ne.s32.totalorder %s70, %s73
    %p82 = scmp.eq.s32.totalorder %s13, 1
    %p83 = por %p81, %p82
    %p84 = scmp.ne.s32.totalorder %s73, %s74
    %p85 = scmp.eq.s32.totalorder %s13, 0
    %p86 = por %p84, %p85
    %p87 = scmp.ne.s32.totalorder %s73, %s74
    %p88 = scmp.eq.s32.totalorder %s14, 1
    %p89 = por %p87, %p88
    %p91 = scmp.ne.s32.totalorder %s74, %s90
    %p92 = scmp.eq.s32.totalorder %s14, 0
    %p93 = por %p91, %p92
    %p94 = scmp.le.s32.totalorder 1, %s8
    %p95 = scmp.lt.s32.totalorder %s8, 3
    %p96 = pnand %p94, %p95
    %p97 = pneg %p96
    // Predicated region
    $region9: #{tpu_custom_call.1} parent=5 // pred_check
      _
    $region10: #{tpu_custom_call.1} parent=5 // pred_check_branch
      %99 = sbr.rel (%p96) target = $region12
    $region11: #{tpu_custom_call.1} parent=5 // pred_region
      %s100 = ssub.s32 %s8, 1
    $region12: #{tpu_custom_call.1} parent=5 // pred_fallthru
      _
    %p101 = scmp.lt.s32.totalorder %s8, 2
    // Predicated region
    $region13: #{tpu_custom_call.1} parent=5 // pred_check
      %p102 = pneg %p101
    $region14: #{tpu_custom_call.1} parent=5 // pred_check_branch
      %104 = sbr.rel (%p102) target = $region16
    $region15: #{tpu_custom_call.1} parent=5 // pred_region
      // Predicated region
      $region17: #{tpu_custom_call.1} parent=15 // pred_check
        %p105 = pneg %p28
      $region18: #{tpu_custom_call.1} parent=15 // pred_check_branch
        %107 = sbr.rel (%p105) target = $region20
      $region19: #{tpu_custom_call.1} parent=15 // pred_region
        %s108 = smul.u32 8, %s8
        %p109 = scmp.lt.s32.totalorder %s108, 15
        %s110 = scalar_select %p109, %s108, 15
        %s111 = smul.addr %s110, 8
        %s112 = scalar_lea.vmem %s0, %s111
        %s113 = smul.u32 8, %s8
      $region20: #{tpu_custom_call.1} parent=15 // pred_fallthru
        _
      // Predicated region
      $region21: #{tpu_custom_call.1} parent=15 // pred_check
        %p114 = pneg %p54
      $region22: #{tpu_custom_call.1} parent=15 // pred_check_branch
        %116 = sbr.rel (%p114) target = $region24
      $region23: #{tpu_custom_call.1} parent=15 // pred_region
        %s117 = smul.u32 8, %s8
        %p118 = scmp.lt.s32.totalorder %s117, 15
        %s119 = scalar_select %p118, %s117, 15
        %s120 = smul.addr %s119, 8
        %s121 = scalar_lea.vmem %s1, %s120
        %s122 = smul.u32 8, %s8
      $region24: #{tpu_custom_call.1} parent=15 // pred_fallthru
        _
    $region16: #{tpu_custom_call.1} parent=5 // pred_fallthru
      _
    %p123 = scmp.le.s32.totalorder 1, %s8
    %p124 = scmp.lt.s32.totalorder %s8, 3
    %p125 = pnand %p123, %p124
    %p126 = pneg %p125
    // Predicated region
    $region25: #{tpu_custom_call.1} parent=5 // pred_check
      _
    $region26: #{tpu_custom_call.1} parent=5 // pred_check_branch
      %128 = sbr.rel (%p125) target = $region28
    $region27: #{tpu_custom_call.1} parent=5 // pred_region
      %s129 = ssub.s32 %s8, 1
      %s130 = smul.u32 8, %s13
      %p131 = scmp.lt.s32.totalorder %s130, 15
      %s132 = scalar_select %p131, %s130, 15
      %s133 = smul.addr %s132, 8
      %s134 = scalar_lea.vmem %s0, %s133
      %p135 = pneg %p34
      %p136 = pneg %p31
      %s137 = smul.u32 8, %s13
      %p138 = scmp.lt.s32.totalorder %s137, 15
      %s139 = scalar_select %p138, %s137, 15
      %s140 = smul.addr %s139, 8
      %s141 = scalar_lea.vmem %s1, %s140
      %p142 = pneg %p60
      %p143 = pneg %p57
      %p144 = pneg %p86
      %p145 = pneg %p83
      %s146 = smul.u32 8, %s13
      %p147 = scmp.lt.s32.totalorder %s146, 15
      %s148 = scalar_select %p147, %s146, 15
      %s149 = smul.addr %s148, 8
      %s150 = scalar_lea.vmem %s2, %s149
      %s151 = smul.u32 8, %s13
      %p152 = scmp.lt.s32.totalorder %s151, 15
      %s153 = scalar_select %p152, %s151, 15
      %s154 = smul.addr %s153, 8
      %s155 = scalar_lea.vmem %s0, %s154
      %s156 = smul.u32 8, %s13
      %s157 = smul.u32 8, %s13
      %p158 = scmp.lt.s32.totalorder %s157, 15
      %s159 = scalar_select %p158, %s157, 15
      %s160 = smul.addr %s159, 8
      %s161 = scalar_lea.vmem %s1, %s160
      %s162 = smul.u32 8, %s13
      %s163 = smul.u32 8, %s13
      %p164 = scmp.lt.s32.totalorder %s163, 15
      %s165 = scalar_select %p164, %s163, 15
      %s166 = smul.addr %s165, 8
      %s167 = scalar_lea.vmem %s2, %s166
      %s168 = smul.u32 8, %s13
      %v169 = vld [vmem:[%s155] sm:$0xff]
      %v170 = vld [vmem:[%s155 + $0x8] sm:$0xff]
      %v171 = vld [vmem:[%s155 + $0x10] sm:$0xff]
      %v172 = vld [vmem:[%s155 + $0x18] sm:$0xff]
      %v173 = vld [vmem:[%s155 + $0x20] sm:$0xff]
      %v174 = vld [vmem:[%s155 + $0x28] sm:$0xff]
      %v175 = vld [vmem:[%s155 + $0x30] sm:$0xff]
      %v176 = vld [vmem:[%s155 + $0x38] sm:$0xff]
      %v177 = vld [vmem:[%s161] sm:$0xff]
      %v178 = vld [vmem:[%s161 + $0x8] sm:$0xff]
      %v179 = vld [vmem:[%s161 + $0x10] sm:$0xff]
      %v180 = vld [vmem:[%s161 + $0x18] sm:$0xff]
      %v181 = vld [vmem:[%s161 + $0x20] sm:$0xff]
      %v182 = vld [vmem:[%s161 + $0x28] sm:$0xff]
      %v183 = vld [vmem:[%s161 + $0x30] sm:$0xff]
      %v184 = vld [vmem:[%s161 + $0x38] sm:$0xff]
      %v185 = vlaneseq
      %v186 = vshrl.u32 %v185, 7
      %v187 = vadd.s32 %v186, 8
      %v188 = vadd.s32 %v186, 16
      %v189 = vadd.s32 %v186, 24
      %v190 = vadd.s32 %v186, 32
      %v191 = vadd.s32 %v186, 40
      %v192 = vadd.s32 %v186, 48
      %v193 = vadd.s32 %v186, 56
      %vm194 = vcmp.lt.s32.totalorder %v186, 0
      %v195 = vsub.s32 0, %v186
      %v196 = vsel %vm194, %v195, %v186
      %v197 = vshrl.u32 %v196, 4
      %v198 = vand.u32 %v196, 15
      %v199 = vsub.s32 0, %v198
      %v200 = vsel %vm194, %v199, %v198
      %vm201 = vcmp.lt.s32.totalorder %v187, 0
      %v202 = vsub.s32 0, %v187
      %v203 = vsel %vm201, %v202, %v187
      %v204 = vshrl.u32 %v203, 4
      %v205 = vand.u32 %v203, 15
      %v206 = vsub.s32 0, %v205
      %v207 = vsel %vm201, %v206, %v205
      %vm208 = vcmp.lt.s32.totalorder %v188, 0
      %v209 = vsub.s32 0, %v188
      %v210 = vsel %vm208, %v209, %v188
      %v211 = vshrl.u32 %v210, 4
      %v212 = vand.u32 %v210, 15
      %v213 = vsub.s32 0, %v212
      %v214 = vsel %vm208, %v213, %v212
      %vm215 = vcmp.lt.s32.totalorder %v189, 0
      %v216 = vsub.s32 0, %v189
      %v217 = vsel %vm215, %v216, %v189
      %v218 = vshrl.u32 %v217, 4
      %v219 = vand.u32 %v217, 15
      %v220 = vsub.s32 0, %v219
      %v221 = vsel %vm215, %v220, %v219
      %vm222 = vcmp.lt.s32.totalorder %v190, 0
      %v223 = vsub.s32 0, %v190
      %v224 = vsel %vm222, %v223, %v190
      %v225 = vshrl.u32 %v224, 4
      %v226 = vand.u32 %v224, 15
      %v227 = vsub.s32 0, %v226
      %v228 = vsel %vm222, %v227, %v226
      %vm229 = vcmp.lt.s32.totalorder %v191, 0
      %v230 = vsub.s32 0, %v191
      %v231 = vsel %vm229, %v230, %v191
      %v232 = vshrl.u32 %v231, 4
      %v233 = vand.u32 %v231, 15
      %v234 = vsub.s32 0, %v233
      %v235 = vsel %vm229, %v234, %v233
      %vm236 = vcmp.lt.s32.totalorder %v192, 0
      %v237 = vsub.s32 0, %v192
      %v238 = vsel %vm236, %v237, %v192
      %v239 = vshrl.u32 %v238, 4
      %v240 = vand.u32 %v238, 15
      %v241 = vsub.s32 0, %v240
      %v242 = vsel %vm236, %v241, %v240
      %vm243 = vcmp.lt.s32.totalorder %v193, 0
      %v244 = vsub.s32 0, %v193
      %v245 = vsel %vm243, %v244, %v193
      %v246 = vshrl.u32 %v245, 4
      %v247 = vand.u32 %v245, 15
      %v248 = vsub.s32 0, %v247
      %v249 = vsel %vm243, %v248, %v247
      %vm250 = vcmp.ne.s32.totalorder %v200, 0
      %vm251 = vcmp.ne.s32.totalorder %v207, 0
      %vm252 = vcmp.ne.s32.totalorder %v214, 0
      %vm253 = vcmp.ne.s32.totalorder %v221, 0
      %vm254 = vcmp.ne.s32.totalorder %v228, 0
      %vm255 = vcmp.ne.s32.totalorder %v235, 0
      %vm256 = vcmp.ne.s32.totalorder %v242, 0
      %vm257 = vcmp.ne.s32.totalorder %v249, 0
      %vm258 = vcmp.lt.s32.totalorder %v200, 0
      %vm259 = vcmp.lt.s32.totalorder %v207, 0
      %vm260 = vcmp.lt.s32.totalorder %v214, 0
      %vm261 = vcmp.lt.s32.totalorder %v221, 0
      %vm262 = vcmp.lt.s32.totalorder %v228, 0
      %vm263 = vcmp.lt.s32.totalorder %v235, 0
      %vm264 = vcmp.lt.s32.totalorder %v242, 0
      %vm265 = vcmp.lt.s32.totalorder %v249, 0
      %vm266 = vmand %vm258, %vm250
      %vm267 = vmand %vm259, %vm251
      %vm268 = vmand %vm260, %vm252
      %vm269 = vmand %vm261, %vm253
      %vm270 = vmand %vm262, %vm254
      %vm271 = vmand %vm263, %vm255
      %vm272 = vmand %vm264, %vm256
      %vm273 = vmand %vm265, %vm257
      %v274 = vadd.s32 %v200, 16
      %v275 = vadd.s32 %v207, 16
      %v276 = vadd.s32 %v214, 16
      %v277 = vadd.s32 %v221, 16
      %v278 = vadd.s32 %v228, 16
      %v279 = vadd.s32 %v235, 16
      %v280 = vadd.s32 %v242, 16
      %v281 = vadd.s32 %v249, 16
      %v282 = vsel %vm266, %v274, %v200
      %v283 = vsel %vm267, %v275, %v207
      %v284 = vsel %vm268, %v276, %v214
      %v285 = vsel %vm269, %v277, %v221
      %v286 = vsel %vm270, %v278, %v228
      %v287 = vsel %vm271, %v279, %v235
      %v288 = vsel %vm272, %v280, %v242
      %v289 = vsel %vm273, %v281, %v249
      %v290 = vlaneseq
      %v291 = vand.u32 %v290, 127
      %vm292 = vcmp.eq.s32.totalorder %v282, 0
      %vm293 = vcmp.eq.s32.totalorder %v283, 0
      %vm294 = vcmp.eq.s32.totalorder %v284, 0
      %vm295 = vcmp.eq.s32.totalorder %v285, 0
      %vm296 = vcmp.eq.s32.totalorder %v286, 0
      %vm297 = vcmp.eq.s32.totalorder %v287, 0
      %vm298 = vcmp.eq.s32.totalorder %v288, 0
      %vm299 = vcmp.eq.s32.totalorder %v289, 0
      %vm300 = vcmp.eq.s32.totalorder %v282, 15
      %vm301 = vcmp.eq.s32.totalorder %v283, 15
      %vm302 = vcmp.eq.s32.totalorder %v284, 15
      %vm303 = vcmp.eq.s32.totalorder %v285, 15
      %vm304 = vcmp.eq.s32.totalorder %v286, 15
      %vm305 = vcmp.eq.s32.totalorder %v287, 15
      %vm306 = vcmp.eq.s32.totalorder %v288, 15
      %vm307 = vcmp.eq.s32.totalorder %v289, 15
      %vm308 = vcmp.eq.s32.totalorder %v291, 0
      %vm309 = vcmp.eq.s32.totalorder %v291, 15
      %v310 = vrot.slane %v169, 7
      %v311 = vrot.slane %v170, 7
      %v312 = vrot.slane %v171, 7
      %v313 = vrot.slane %v172, 7
      %v314 = vrot.slane %v173, 7
      %v315 = vrot.slane %v174, 7
      %v316 = vrot.slane %v175, 7
      %v317 = vrot.slane %v176, 7
      %vm318 = vcmp.lt.s32.totalorder %v186, 1
      %v319 = vsel %vm318, %v316, %v317
      %v320 = vsel %vm318, %v315, %v316
      %v321 = vsel %vm318, %v314, %v315
      %v322 = vsel %vm318, %v313, %v314
      %v323 = vsel %vm318, %v312, %v313
      %v324 = vsel %vm318, %v311, %v312
      %v325 = vsel %vm318, %v310, %v311
      %v326 = vsel %vm318, %v317, %v310
      %v327 = vrot.slane %v169, 1
      %v328 = vrot.slane %v170, 1
      %v329 = vrot.slane %v171, 1
      %v330 = vrot.slane %v172, 1
      %v331 = vrot.slane %v173, 1
      %v332 = vrot.slane %v174, 1
      %v333 = vrot.slane %v175, 1
      %v334 = vrot.slane %v176, 1
      %vm335 = vcmp.lt.s32.totalorder %v186, 7
      %v336 = vsel %vm335, %v333, %v334
      %v337 = vsel %vm335, %v332, %v333
      %v338 = vsel %vm335, %v331, %v332
      %v339 = vsel %vm335, %v330, %v331
      %v340 = vsel %vm335, %v329, %v330
      %v341 = vsel %vm335, %v328, %v329
      %v342 = vsel %vm335, %v327, %v328
      %v343 = vsel %vm335, %v334, %v327
      %v344 = vsel %vm292, %v342, %v326
      %v345 = vsel %vm293, %v341, %v325
      %v346 = vsel %vm294, %v340, %v324
      %v347 = vsel %vm295, %v339, %v323
      %v348 = vsel %vm296, %v338, %v322
      %v349 = vsel %vm297, %v337, %v321
      %v350 = vsel %vm298, %v336, %v320
      %v351 = vsel %vm299, %v343, %v319
      %v352 = vadd.f32 %v169, %v344
      %v353 = vadd.f32 %v170, %v345
      %v354 = vadd.f32 %v171, %v346
      %v355 = vadd.f32 %v172, %v347
      %v356 = vadd.f32 %v173, %v348
      %v357 = vadd.f32 %v174, %v349
      %v358 = vadd.f32 %v175, %v350
      %v359 = vadd.f32 %v176, %v351
      %v360 = vsel %vm300, %v326, %v342
      %v361 = vsel %vm301, %v325, %v341
      %v362 = vsel %vm302, %v324, %v340
      %v363 = vsel %vm303, %v323, %v339
      %v364 = vsel %vm304, %v322, %v338
      %v365 = vsel %vm305, %v321, %v337
      %v366 = vsel %vm306, %v320, %v336
      %v367 = vsel %vm307, %v319, %v343
      %v368 = vadd.f32 %v352, %v360
      %v369 = vadd.f32 %v353, %v361
      %v370 = vadd.f32 %v354, %v362
      %v371 = vadd.f32 %v355, %v363
      %v372 = vadd.f32 %v356, %v364
      %v373 = vadd.f32 %v357, %v365
      %v374 = vadd.f32 %v358, %v366
      %v375 = vadd.f32 %v359, %v367
      %vm376 = vcmask 1047680
      %377 = vrot.lane.b32.xlu0 %v368, 16
      %v378 = vpop.permute.xlu0 %377
      %v379 = vsel %vm376, %v378, %v368
      %380 = vrot.lane.b32.xlu0 %v369, 16
      %v381 = vpop.permute.xlu0 %380
      %v382 = vsel %vm376, %v381, %v369
      %383 = vrot.lane.b32.xlu0 %v370, 16
      %v384 = vpop.permute.xlu0 %383
      %v385 = vsel %vm376, %v384, %v370
      %386 = vrot.lane.b32.xlu0 %v371, 16
      %v387 = vpop.permute.xlu0 %386
      %v388 = vsel %vm376, %v387, %v371
      %389 = vrot.lane.b32.xlu0 %v372, 16
      %v390 = vpop.permute.xlu0 %389
      %v391 = vsel %vm376, %v390, %v372
      %392 = vrot.lane.b32.xlu0 %v373, 16
      %v393 = vpop.permute.xlu0 %392
      %v394 = vsel %vm376, %v393, %v373
      %395 = vrot.lane.b32.xlu0 %v374, 16
      %v396 = vpop.permute.xlu0 %395
      %v397 = vsel %vm376, %v396, %v374
      %398 = vrot.lane.b32.xlu0 %v375, 16
      %v399 = vpop.permute.xlu0 %398
      %v400 = vsel %vm376, %v399, %v375
      %401 = vrot.lane.b32.xlu0 %v379, 16
      %v402 = vpop.permute.xlu0 %401
      %403 = vrot.lane.b32.xlu0 %v382, 16
      %v404 = vpop.permute.xlu0 %403
      %405 = vrot.lane.b32.xlu0 %v385, 16
      %v406 = vpop.permute.xlu0 %405
      %407 = vrot.lane.b32.xlu0 %v388, 16
      %v408 = vpop.permute.xlu0 %407
      %409 = vrot.lane.b32.xlu0 %v391, 16
      %v410 = vpop.permute.xlu0 %409
      %411 = vrot.lane.b32.xlu0 %v394, 16
      %v412 = vpop.permute.xlu0 %411
      %413 = vrot.lane.b32.xlu0 %v397, 16
      %v414 = vpop.permute.xlu0 %413
      %415 = vrot.lane.b32.xlu0 %v400, 16
      %v416 = vpop.permute.xlu0 %415
      %v417 = vsel %vm376, %v402, %v368
      %v418 = vsel %vm376, %v404, %v369
      %v419 = vsel %vm376, %v406, %v370
      %v420 = vsel %vm376, %v408, %v371
      %v421 = vsel %vm376, %v410, %v372
      %v422 = vsel %vm376, %v412, %v373
      %v423 = vsel %vm376, %v414, %v374
      %v424 = vsel %vm376, %v416, %v375
      %433 = vrot.lane.b32.xlu0 %v417, 127
      %v434 = vpop.permute.xlu0 %433
      %435 = vrot.lane.b32.xlu0 %v418, 127
      %v436 = vpop.permute.xlu0 %435
      %437 = vrot.lane.b32.xlu0 %v419, 127
      %v438 = vpop.permute.xlu0 %437
      %439 = vrot.lane.b32.xlu0 %v420, 127
      %v440 = vpop.permute.xlu0 %439
      %441 = vrot.lane.b32.xlu0 %v421, 127
      %v442 = vpop.permute.xlu0 %441
      %443 = vrot.lane.b32.xlu0 %v422, 127
      %v444 = vpop.permute.xlu0 %443
      %445 = vrot.lane.b32.xlu0 %v423, 127
      %v446 = vpop.permute.xlu0 %445
      %447 = vrot.lane.b32.xlu0 %v424, 127
      %v448 = vpop.permute.xlu0 %447
      %457 = vrot.lane.b32.xlu0 %v417, 113
      %v458 = vpop.permute.xlu0 %457
      %459 = vrot.lane.b32.xlu0 %v418, 113
      %v460 = vpop.permute.xlu0 %459
      %461 = vrot.lane.b32.xlu0 %v419, 113
      %v462 = vpop.permute.xlu0 %461
      %463 = vrot.lane.b32.xlu0 %v420, 113
      %v464 = vpop.permute.xlu0 %463
      %465 = vrot.lane.b32.xlu0 %v421, 113
      %v466 = vpop.permute.xlu0 %465
      %467 = vrot.lane.b32.xlu0 %v422, 113
      %v468 = vpop.permute.xlu0 %467
      %469 = vrot.lane.b32.xlu0 %v423, 113
      %v470 = vpop.permute.xlu0 %469
      %471 = vrot.lane.b32.xlu0 %v424, 113
      %v472 = vpop.permute.xlu0 %471
      %v481 = vsel %vm308, %v434, %v458
      %v482 = vsel %vm308, %v436, %v460
      %v483 = vsel %vm308, %v438, %v462
      %v484 = vsel %vm308, %v440, %v464
      %v485 = vsel %vm308, %v442, %v466
      %v486 = vsel %vm308, %v444, %v468
      %v487 = vsel %vm308, %v446, %v470
      %v488 = vsel %vm308, %v448, %v472
      %v489 = vadd.f32 %v368, %v481
      %v490 = vadd.f32 %v369, %v482
      %v491 = vadd.f32 %v370, %v483
      %v492 = vadd.f32 %v371, %v484
      %v493 = vadd.f32 %v372, %v485
      %v494 = vadd.f32 %v373, %v486
      %v495 = vadd.f32 %v374, %v487
      %v496 = vadd.f32 %v375, %v488
      %v497 = vsel %vm309, %v458, %v434
      %v498 = vsel %vm309, %v460, %v436
      %v499 = vsel %vm309, %v462, %v438
      %v500 = vsel %vm309, %v464, %v440
      %v501 = vsel %vm309, %v466, %v442
      %v502 = vsel %vm309, %v468, %v444
      %v503 = vsel %vm309, %v470, %v446
      %v504 = vsel %vm309, %v472, %v448
      %v505 = vadd.f32 %v489, %v497
      %v506 = vadd.f32 %v490, %v498
      %v507 = vadd.f32 %v491, %v499
      %v508 = vadd.f32 %v492, %v500
      %v509 = vadd.f32 %v493, %v501
      %v510 = vadd.f32 %v494, %v502
      %v511 = vadd.f32 %v495, %v503
      %v512 = vadd.f32 %v496, %v504
      %v513 = vmul.f32 %v505, 0.11111111
      %v514 = vmul.f32 %v506, 0.11111111
      %v515 = vmul.f32 %v507, 0.11111111
      %v516 = vmul.f32 %v508, 0.11111111
      %v517 = vmul.f32 %v509, 0.11111111
      %v518 = vmul.f32 %v510, 0.11111111
      %v519 = vmul.f32 %v511, 0.11111111
      %v520 = vmul.f32 %v512, 0.11111111
      %v521 = vrot.slane %v177, 7
      %v522 = vrot.slane %v178, 7
      %v523 = vrot.slane %v179, 7
      %v524 = vrot.slane %v180, 7
      %v525 = vrot.slane %v181, 7
      %v526 = vrot.slane %v182, 7
      %v527 = vrot.slane %v183, 7
      %v528 = vrot.slane %v184, 7
      %v529 = vsel %vm318, %v527, %v528
      %v530 = vsel %vm318, %v526, %v527
      %v531 = vsel %vm318, %v525, %v526
      %v532 = vsel %vm318, %v524, %v525
      %v533 = vsel %vm318, %v523, %v524
      %v534 = vsel %vm318, %v522, %v523
      %v535 = vsel %vm318, %v521, %v522
      %v536 = vsel %vm318, %v528, %v521
      %v537 = vrot.slane %v177, 1
      %v538 = vrot.slane %v178, 1
      %v539 = vrot.slane %v179, 1
      %v540 = vrot.slane %v180, 1
      %v541 = vrot.slane %v181, 1
      %v542 = vrot.slane %v182, 1
      %v543 = vrot.slane %v183, 1
      %v544 = vrot.slane %v184, 1
      %v545 = vsel %vm335, %v543, %v544
      %v546 = vsel %vm335, %v542, %v543
      %v547 = vsel %vm335, %v541, %v542
      %v548 = vsel %vm335, %v540, %v541
      %v549 = vsel %vm335, %v539, %v540
      %v550 = vsel %vm335, %v538, %v539
      %v551 = vsel %vm335, %v537, %v538
      %v552 = vsel %vm335, %v544, %v537
      %v553 = vsel %vm292, %v551, %v536
      %v554 = vsel %vm293, %v550, %v535
      %v555 = vsel %vm294, %v549, %v534
      %v556 = vsel %vm295, %v548, %v533
      %v557 = vsel %vm296, %v547, %v532
      %v558 = vsel %vm297, %v546, %v531
      %v559 = vsel %vm298, %v545, %v530
      %v560 = vsel %vm299, %v552, %v529
      %v561 = vadd.f32 %v177, %v553
      %v562 = vadd.f32 %v178, %v554
      %v563 = vadd.f32 %v179, %v555
      %v564 = vadd.f32 %v180, %v556
      %v565 = vadd.f32 %v181, %v557
      %v566 = vadd.f32 %v182, %v558
      %v567 = vadd.f32 %v183, %v559
      %v568 = vadd.f32 %v184, %v560
      %v569 = vsel %vm300, %v536, %v551
      %v570 = vsel %vm301, %v535, %v550
      %v571 = vsel %vm302, %v534, %v549
      %v572 = vsel %vm303, %v533, %v548
      %v573 = vsel %vm304, %v532, %v547
      %v574 = vsel %vm305, %v531, %v546
      %v575 = vsel %vm306, %v530, %v545
      %v576 = vsel %vm307, %v529, %v552
      %v577 = vadd.f32 %v561, %v569
      %v578 = vadd.f32 %v562, %v570
      %v579 = vadd.f32 %v563, %v571
      %v580 = vadd.f32 %v564, %v572
      %v581 = vadd.f32 %v565, %v573
      %v582 = vadd.f32 %v566, %v574
      %v583 = vadd.f32 %v567, %v575
      %v584 = vadd.f32 %v568, %v576
      %585 = vrot.lane.b32.xlu0 %v577, 16
      %v586 = vpop.permute.xlu0 %585
      %v587 = vsel %vm376, %v586, %v577
      %588 = vrot.lane.b32.xlu0 %v578, 16
      %v589 = vpop.permute.xlu0 %588
      %v590 = vsel %vm376, %v589, %v578
      %591 = vrot.lane.b32.xlu0 %v579, 16
      %v592 = vpop.permute.xlu0 %591
      %v593 = vsel %vm376, %v592, %v579
      %594 = vrot.lane.b32.xlu0 %v580, 16
      %v595 = vpop.permute.xlu0 %594
      %v596 = vsel %vm376, %v595, %v580
      %597 = vrot.lane.b32.xlu0 %v581, 16
      %v598 = vpop.permute.xlu0 %597
      %v599 = vsel %vm376, %v598, %v581
      %600 = vrot.lane.b32.xlu0 %v582, 16
      %v601 = vpop.permute.xlu0 %600
      %v602 = vsel %vm376, %v601, %v582
      %603 = vrot.lane.b32.xlu0 %v583, 16
      %v604 = vpop.permute.xlu0 %603
      %v605 = vsel %vm376, %v604, %v583
      %606 = vrot.lane.b32.xlu0 %v584, 16
      %v607 = vpop.permute.xlu0 %606
      %v608 = vsel %vm376, %v607, %v584
      %609 = vrot.lane.b32.xlu0 %v587, 16
      %v610 = vpop.permute.xlu0 %609
      %611 = vrot.lane.b32.xlu0 %v590, 16
      %v612 = vpop.permute.xlu0 %611
      %613 = vrot.lane.b32.xlu0 %v593, 16
      %v614 = vpop.permute.xlu0 %613
      %615 = vrot.lane.b32.xlu0 %v596, 16
      %v616 = vpop.permute.xlu0 %615
      %617 = vrot.lane.b32.xlu0 %v599, 16
      %v618 = vpop.permute.xlu0 %617
      %619 = vrot.lane.b32.xlu0 %v602, 16
      %v620 = vpop.permute.xlu0 %619
      %621 = vrot.lane.b32.xlu0 %v605, 16
      %v622 = vpop.permute.xlu0 %621
      %623 = vrot.lane.b32.xlu0 %v608, 16
      %v624 = vpop.permute.xlu0 %623
      %v625 = vsel %vm376, %v610, %v577
      %v626 = vsel %vm376, %v612, %v578
      %v627 = vsel %vm376, %v614, %v579
      %v628 = vsel %vm376, %v616, %v580
      %v629 = vsel %vm376, %v618, %v581
      %v630 = vsel %vm376, %v620, %v582
      %v631 = vsel %vm376, %v622, %v583
      %v632 = vsel %vm376, %v624, %v584
      %641 = vrot.lane.b32.xlu0 %v625, 127
      %v642 = vpop.permute.xlu0 %641
      %643 = vrot.lane.b32.xlu0 %v626, 127
      %v644 = vpop.permute.xlu0 %643
      %645 = vrot.lane.b32.xlu0 %v627, 127
      %v646 = vpop.permute.xlu0 %645
      %647 = vrot.lane.b32.xlu0 %v628, 127
      %v648 = vpop.permute.xlu0 %647
      %649 = vrot.lane.b32.xlu0 %v629, 127
      %v650 = vpop.permute.xlu0 %649
      %651 = vrot.lane.b32.xlu0 %v630, 127
      %v652 = vpop.permute.xlu0 %651
      %653 = vrot.lane.b32.xlu0 %v631, 127
      %v654 = vpop.permute.xlu0 %653
      %655 = vrot.lane.b32.xlu0 %v632, 127
      %v656 = vpop.permute.xlu0 %655
      %665 = vrot.lane.b32.xlu0 %v625, 113
      %v666 = vpop.permute.xlu0 %665
      %667 = vrot.lane.b32.xlu0 %v626, 113
      %v668 = vpop.permute.xlu0 %667
      %669 = vrot.lane.b32.xlu0 %v627, 113
      %v670 = vpop.permute.xlu0 %669
      %671 = vrot.lane.b32.xlu0 %v628, 113
      %v672 = vpop.permute.xlu0 %671
      %673 = vrot.lane.b32.xlu0 %v629, 113
      %v674 = vpop.permute.xlu0 %673
      %675 = vrot.lane.b32.xlu0 %v630, 113
      %v676 = vpop.permute.xlu0 %675
      %677 = vrot.lane.b32.xlu0 %v631, 113
      %v678 = vpop.permute.xlu0 %677
      %679 = vrot.lane.b32.xlu0 %v632, 113
      %v680 = vpop.permute.xlu0 %679
      %v689 = vsel %vm308, %v642, %v666
      %v690 = vsel %vm308, %v644, %v668
      %v691 = vsel %vm308, %v646, %v670
      %v692 = vsel %vm308, %v648, %v672
      %v693 = vsel %vm308, %v650, %v674
      %v694 = vsel %vm308, %v652, %v676
      %v695 = vsel %vm308, %v654, %v678
      %v696 = vsel %vm308, %v656, %v680
      %v697 = vadd.f32 %v577, %v689
      %v698 = vadd.f32 %v578, %v690
      %v699 = vadd.f32 %v579, %v691
      %v700 = vadd.f32 %v580, %v692
      %v701 = vadd.f32 %v581, %v693
      %v702 = vadd.f32 %v582, %v694
      %v703 = vadd.f32 %v583, %v695
      %v704 = vadd.f32 %v584, %v696
      %v705 = vsel %vm309, %v666, %v642
      %v706 = vsel %vm309, %v668, %v644
      %v707 = vsel %vm309, %v670, %v646
      %v708 = vsel %vm309, %v672, %v648
      %v709 = vsel %vm309, %v674, %v650
      %v710 = vsel %vm309, %v676, %v652
      %v711 = vsel %vm309, %v678, %v654
      %v712 = vsel %vm309, %v680, %v656
      %v713 = vadd.f32 %v697, %v705
      %v714 = vadd.f32 %v698, %v706
      %v715 = vadd.f32 %v699, %v707
      %v716 = vadd.f32 %v700, %v708
      %v717 = vadd.f32 %v701, %v709
      %v718 = vadd.f32 %v702, %v710
      %v719 = vadd.f32 %v703, %v711
      %v720 = vadd.f32 %v704, %v712
      %v721 = vmul.f32 %v713, 0.11111111
      %v722 = vmul.f32 %v714, 0.11111111
      %v723 = vmul.f32 %v715, 0.11111111
      %v724 = vmul.f32 %v716, 0.11111111
      %v725 = vmul.f32 %v717, 0.11111111
      %v726 = vmul.f32 %v718, 0.11111111
      %v727 = vmul.f32 %v719, 0.11111111
      %v728 = vmul.f32 %v720, 0.11111111
      %v729 = vmul.f32 %v169, %v169
      %v730 = vmul.f32 %v170, %v170
      %v731 = vmul.f32 %v171, %v171
      %v732 = vmul.f32 %v172, %v172
      %v733 = vmul.f32 %v173, %v173
      %v734 = vmul.f32 %v174, %v174
      %v735 = vmul.f32 %v175, %v175
      %v736 = vmul.f32 %v176, %v176
      %v737 = vrot.slane %v729, 7
      %v738 = vrot.slane %v730, 7
      %v739 = vrot.slane %v731, 7
      %v740 = vrot.slane %v732, 7
      %v741 = vrot.slane %v733, 7
      %v742 = vrot.slane %v734, 7
      %v743 = vrot.slane %v735, 7
      %v744 = vrot.slane %v736, 7
      %v745 = vsel %vm318, %v743, %v744
      %v746 = vsel %vm318, %v742, %v743
      %v747 = vsel %vm318, %v741, %v742
      %v748 = vsel %vm318, %v740, %v741
      %v749 = vsel %vm318, %v739, %v740
      %v750 = vsel %vm318, %v738, %v739
      %v751 = vsel %vm318, %v737, %v738
      %v752 = vsel %vm318, %v744, %v737
      %v753 = vrot.slane %v729, 1
      %v754 = vrot.slane %v730, 1
      %v755 = vrot.slane %v731, 1
      %v756 = vrot.slane %v732, 1
      %v757 = vrot.slane %v733, 1
      %v758 = vrot.slane %v734, 1
      %v759 = vrot.slane %v735, 1
      %v760 = vrot.slane %v736, 1
      %v761 = vsel %vm335, %v759, %v760
      %v762 = vsel %vm335, %v758, %v759
      %v763 = vsel %vm335, %v757, %v758
      %v764 = vsel %vm335, %v756, %v757
      %v765 = vsel %vm335, %v755, %v756
      %v766 = vsel %vm335, %v754, %v755
      %v767 = vsel %vm335, %v753, %v754
      %v768 = vsel %vm335, %v760, %v753
      %v769 = vsel %vm292, %v767, %v752
      %v770 = vsel %vm293, %v766, %v751
      %v771 = vsel %vm294, %v765, %v750
      %v772 = vsel %vm295, %v764, %v749
      %v773 = vsel %vm296, %v763, %v748
      %v774 = vsel %vm297, %v762, %v747
      %v775 = vsel %vm298, %v761, %v746
      %v776 = vsel %vm299, %v768, %v745
      %v777 = vadd.f32 %v729, %v769
      %v778 = vadd.f32 %v730, %v770
      %v779 = vadd.f32 %v731, %v771
      %v780 = vadd.f32 %v732, %v772
      %v781 = vadd.f32 %v733, %v773
      %v782 = vadd.f32 %v734, %v774
      %v783 = vadd.f32 %v735, %v775
      %v784 = vadd.f32 %v736, %v776
      %v785 = vsel %vm300, %v752, %v767
      %v786 = vsel %vm301, %v751, %v766
      %v787 = vsel %vm302, %v750, %v765
      %v788 = vsel %vm303, %v749, %v764
      %v789 = vsel %vm304, %v748, %v763
      %v790 = vsel %vm305, %v747, %v762
      %v791 = vsel %vm306, %v746, %v761
      %v792 = vsel %vm307, %v745, %v768
      %v793 = vadd.f32 %v777, %v785
      %v794 = vadd.f32 %v778, %v786
      %v795 = vadd.f32 %v779, %v787
      %v796 = vadd.f32 %v780, %v788
      %v797 = vadd.f32 %v781, %v789
      %v798 = vadd.f32 %v782, %v790
      %v799 = vadd.f32 %v783, %v791
      %v800 = vadd.f32 %v784, %v792
      %801 = vrot.lane.b32.xlu0 %v793, 16
      %v802 = vpop.permute.xlu0 %801
      %v803 = vsel %vm376, %v802, %v793
      %804 = vrot.lane.b32.xlu0 %v794, 16
      %v805 = vpop.permute.xlu0 %804
      %v806 = vsel %vm376, %v805, %v794
      %807 = vrot.lane.b32.xlu0 %v795, 16
      %v808 = vpop.permute.xlu0 %807
      %v809 = vsel %vm376, %v808, %v795
      %810 = vrot.lane.b32.xlu0 %v796, 16
      %v811 = vpop.permute.xlu0 %810
      %v812 = vsel %vm376, %v811, %v796
      %813 = vrot.lane.b32.xlu0 %v797, 16
      %v814 = vpop.permute.xlu0 %813
      %v815 = vsel %vm376, %v814, %v797
      %816 = vrot.lane.b32.xlu0 %v798, 16
      %v817 = vpop.permute.xlu0 %816
      %v818 = vsel %vm376, %v817, %v798
      %819 = vrot.lane.b32.xlu0 %v799, 16
      %v820 = vpop.permute.xlu0 %819
      %v821 = vsel %vm376, %v820, %v799
      %822 = vrot.lane.b32.xlu0 %v800, 16
      %v823 = vpop.permute.xlu0 %822
      %v824 = vsel %vm376, %v823, %v800
      %825 = vrot.lane.b32.xlu0 %v803, 16
      %v826 = vpop.permute.xlu0 %825
      %827 = vrot.lane.b32.xlu0 %v806, 16
      %v828 = vpop.permute.xlu0 %827
      %829 = vrot.lane.b32.xlu0 %v809, 16
      %v830 = vpop.permute.xlu0 %829
      %831 = vrot.lane.b32.xlu0 %v812, 16
      %v832 = vpop.permute.xlu0 %831
      %833 = vrot.lane.b32.xlu0 %v815, 16
      %v834 = vpop.permute.xlu0 %833
      %835 = vrot.lane.b32.xlu0 %v818, 16
      %v836 = vpop.permute.xlu0 %835
      %837 = vrot.lane.b32.xlu0 %v821, 16
      %v838 = vpop.permute.xlu0 %837
      %839 = vrot.lane.b32.xlu0 %v824, 16
      %v840 = vpop.permute.xlu0 %839
      %v841 = vsel %vm376, %v826, %v793
      %v842 = vsel %vm376, %v828, %v794
      %v843 = vsel %vm376, %v830, %v795
      %v844 = vsel %vm376, %v832, %v796
      %v845 = vsel %vm376, %v834, %v797
      %v846 = vsel %vm376, %v836, %v798
      %v847 = vsel %vm376, %v838, %v799
      %v848 = vsel %vm376, %v840, %v800
      %857 = vrot.lane.b32.xlu0 %v841, 127
      %v858 = vpop.permute.xlu0 %857
      %859 = vrot.lane.b32.xlu0 %v842, 127
      %v860 = vpop.permute.xlu0 %859
      %861 = vrot.lane.b32.xlu0 %v843, 127
      %v862 = vpop.permute.xlu0 %861
      %863 = vrot.lane.b32.xlu0 %v844, 127
      %v864 = vpop.permute.xlu0 %863
      %865 = vrot.lane.b32.xlu0 %v845, 127
      %v866 = vpop.permute.xlu0 %865
      %867 = vrot.lane.b32.xlu0 %v846, 127
      %v868 = vpop.permute.xlu0 %867
      %869 = vrot.lane.b32.xlu0 %v847, 127
      %v870 = vpop.permute.xlu0 %869
      %871 = vrot.lane.b32.xlu0 %v848, 127
      %v872 = vpop.permute.xlu0 %871
      %881 = vrot.lane.b32.xlu0 %v841, 113
      %v882 = vpop.permute.xlu0 %881
      %883 = vrot.lane.b32.xlu0 %v842, 113
      %v884 = vpop.permute.xlu0 %883
      %885 = vrot.lane.b32.xlu0 %v843, 113
      %v886 = vpop.permute.xlu0 %885
      %887 = vrot.lane.b32.xlu0 %v844, 113
      %v888 = vpop.permute.xlu0 %887
      %889 = vrot.lane.b32.xlu0 %v845, 113
      %v890 = vpop.permute.xlu0 %889
      %891 = vrot.lane.b32.xlu0 %v846, 113
      %v892 = vpop.permute.xlu0 %891
      %893 = vrot.lane.b32.xlu0 %v847, 113
      %v894 = vpop.permute.xlu0 %893
      %895 = vrot.lane.b32.xlu0 %v848, 113
      %v896 = vpop.permute.xlu0 %895
      %v905 = vsel %vm308, %v858, %v882
      %v906 = vsel %vm308, %v860, %v884
      %v907 = vsel %vm308, %v862, %v886
      %v908 = vsel %vm308, %v864, %v888
      %v909 = vsel %vm308, %v866, %v890
      %v910 = vsel %vm308, %v868, %v892
      %v911 = vsel %vm308, %v870, %v894
      %v912 = vsel %vm308, %v872, %v896
      %v913 = vadd.f32 %v793, %v905
      %v914 = vadd.f32 %v794, %v906
      %v915 = vadd.f32 %v795, %v907
      %v916 = vadd.f32 %v796, %v908
      %v917 = vadd.f32 %v797, %v909
      %v918 = vadd.f32 %v798, %v910
      %v919 = vadd.f32 %v799, %v911
      %v920 = vadd.f32 %v800, %v912
      %v921 = vsel %vm309, %v882, %v858
      %v922 = vsel %vm309, %v884, %v860
      %v923 = vsel %vm309, %v886, %v862
      %v924 = vsel %vm309, %v888, %v864
      %v925 = vsel %vm309, %v890, %v866
      %v926 = vsel %vm309, %v892, %v868
      %v927 = vsel %vm309, %v894, %v870
      %v928 = vsel %vm309, %v896, %v872
      %v929 = vadd.f32 %v913, %v921
      %v930 = vadd.f32 %v914, %v922
      %v931 = vadd.f32 %v915, %v923
      %v932 = vadd.f32 %v916, %v924
      %v933 = vadd.f32 %v917, %v925
      %v934 = vadd.f32 %v918, %v926
      %v935 = vadd.f32 %v919, %v927
      %v936 = vadd.f32 %v920, %v928
      %v937 = vmul.f32 %v929, 0.11111111
      %v938 = vmul.f32 %v930, 0.11111111
      %v939 = vmul.f32 %v931, 0.11111111
      %v940 = vmul.f32 %v932, 0.11111111
      %v941 = vmul.f32 %v933, 0.11111111
      %v942 = vmul.f32 %v934, 0.11111111
      %v943 = vmul.f32 %v935, 0.11111111
      %v944 = vmul.f32 %v936, 0.11111111
      %v945 = vmul.f32 %v177, %v177
      %v946 = vmul.f32 %v178, %v178
      %v947 = vmul.f32 %v179, %v179
      %v948 = vmul.f32 %v180, %v180
      %v949 = vmul.f32 %v181, %v181
      %v950 = vmul.f32 %v182, %v182
      %v951 = vmul.f32 %v183, %v183
      %v952 = vmul.f32 %v184, %v184
      %v953 = vrot.slane %v945, 7
      %v954 = vrot.slane %v946, 7
      %v955 = vrot.slane %v947, 7
      %v956 = vrot.slane %v948, 7
      %v957 = vrot.slane %v949, 7
      %v958 = vrot.slane %v950, 7
      %v959 = vrot.slane %v951, 7
      %v960 = vrot.slane %v952, 7
      %v961 = vsel %vm318, %v959, %v960
      %v962 = vsel %vm318, %v958, %v959
      %v963 = vsel %vm318, %v957, %v958
      %v964 = vsel %vm318, %v956, %v957
      %v965 = vsel %vm318, %v955, %v956
      %v966 = vsel %vm318, %v954, %v955
      %v967 = vsel %vm318, %v953, %v954
      %v968 = vsel %vm318, %v960, %v953
      %v969 = vrot.slane %v945, 1
      %v970 = vrot.slane %v946, 1
      %v971 = vrot.slane %v947, 1
      %v972 = vrot.slane %v948, 1
      %v973 = vrot.slane %v949, 1
      %v974 = vrot.slane %v950, 1
      %v975 = vrot.slane %v951, 1
      %v976 = vrot.slane %v952, 1
      %v977 = vsel %vm335, %v975, %v976
      %v978 = vsel %vm335, %v974, %v975
      %v979 = vsel %vm335, %v973, %v974
      %v980 = vsel %vm335, %v972, %v973
      %v981 = vsel %vm335, %v971, %v972
      %v982 = vsel %vm335, %v970, %v971
      %v983 = vsel %vm335, %v969, %v970
      %v984 = vsel %vm335, %v976, %v969
      %v985 = vsel %vm292, %v983, %v968
      %v986 = vsel %vm293, %v982, %v967
      %v987 = vsel %vm294, %v981, %v966
      %v988 = vsel %vm295, %v980, %v965
      %v989 = vsel %vm296, %v979, %v964
      %v990 = vsel %vm297, %v978, %v963
      %v991 = vsel %vm298, %v977, %v962
      %v992 = vsel %vm299, %v984, %v961
      %v993 = vadd.f32 %v945, %v985
      %v994 = vadd.f32 %v946, %v986
      %v995 = vadd.f32 %v947, %v987
      %v996 = vadd.f32 %v948, %v988
      %v997 = vadd.f32 %v949, %v989
      %v998 = vadd.f32 %v950, %v990
      %v999 = vadd.f32 %v951, %v991
      %v1000 = vadd.f32 %v952, %v992
      %v1001 = vsel %vm300, %v968, %v983
      %v1002 = vsel %vm301, %v967, %v982
      %v1003 = vsel %vm302, %v966, %v981
      %v1004 = vsel %vm303, %v965, %v980
      %v1005 = vsel %vm304, %v964, %v979
      %v1006 = vsel %vm305, %v963, %v978
      %v1007 = vsel %vm306, %v962, %v977
      %v1008 = vsel %vm307, %v961, %v984
      %v1009 = vadd.f32 %v993, %v1001
      %v1010 = vadd.f32 %v994, %v1002
      %v1011 = vadd.f32 %v995, %v1003
      %v1012 = vadd.f32 %v996, %v1004
      %v1013 = vadd.f32 %v997, %v1005
      %v1014 = vadd.f32 %v998, %v1006
      %v1015 = vadd.f32 %v999, %v1007
      %v1016 = vadd.f32 %v1000, %v1008
      %1017 = vrot.lane.b32.xlu0 %v1009, 16
      %v1018 = vpop.permute.xlu0 %1017
      %v1019 = vsel %vm376, %v1018, %v1009
      %1020 = vrot.lane.b32.xlu0 %v1010, 16
      %v1021 = vpop.permute.xlu0 %1020
      %v1022 = vsel %vm376, %v1021, %v1010
      %1023 = vrot.lane.b32.xlu0 %v1011, 16
      %v1024 = vpop.permute.xlu0 %1023
      %v1025 = vsel %vm376, %v1024, %v1011
      %1026 = vrot.lane.b32.xlu0 %v1012, 16
      %v1027 = vpop.permute.xlu0 %1026
      %v1028 = vsel %vm376, %v1027, %v1012
      %1029 = vrot.lane.b32.xlu0 %v1013, 16
      %v1030 = vpop.permute.xlu0 %1029
      %v1031 = vsel %vm376, %v1030, %v1013
      %1032 = vrot.lane.b32.xlu0 %v1014, 16
      %v1033 = vpop.permute.xlu0 %1032
      %v1034 = vsel %vm376, %v1033, %v1014
      %1035 = vrot.lane.b32.xlu0 %v1015, 16
      %v1036 = vpop.permute.xlu0 %1035
      %v1037 = vsel %vm376, %v1036, %v1015
      %1038 = vrot.lane.b32.xlu0 %v1016, 16
      %v1039 = vpop.permute.xlu0 %1038
      %v1040 = vsel %vm376, %v1039, %v1016
      %1041 = vrot.lane.b32.xlu0 %v1019, 16
      %v1042 = vpop.permute.xlu0 %1041
      %1043 = vrot.lane.b32.xlu0 %v1022, 16
      %v1044 = vpop.permute.xlu0 %1043
      %1045 = vrot.lane.b32.xlu0 %v1025, 16
      %v1046 = vpop.permute.xlu0 %1045
      %1047 = vrot.lane.b32.xlu0 %v1028, 16
      %v1048 = vpop.permute.xlu0 %1047
      %1049 = vrot.lane.b32.xlu0 %v1031, 16
      %v1050 = vpop.permute.xlu0 %1049
      %1051 = vrot.lane.b32.xlu0 %v1034, 16
      %v1052 = vpop.permute.xlu0 %1051
      %1053 = vrot.lane.b32.xlu0 %v1037, 16
      %v1054 = vpop.permute.xlu0 %1053
      %1055 = vrot.lane.b32.xlu0 %v1040, 16
      %v1056 = vpop.permute.xlu0 %1055
      %v1057 = vsel %vm376, %v1042, %v1009
      %v1058 = vsel %vm376, %v1044, %v1010
      %v1059 = vsel %vm376, %v1046, %v1011
      %v1060 = vsel %vm376, %v1048, %v1012
      %v1061 = vsel %vm376, %v1050, %v1013
      %v1062 = vsel %vm376, %v1052, %v1014
      %v1063 = vsel %vm376, %v1054, %v1015
      %v1064 = vsel %vm376, %v1056, %v1016
      %1073 = vrot.lane.b32.xlu0 %v1057, 127
      %v1074 = vpop.permute.xlu0 %1073
      %1075 = vrot.lane.b32.xlu0 %v1058, 127
      %v1076 = vpop.permute.xlu0 %1075
      %1077 = vrot.lane.b32.xlu0 %v1059, 127
      %v1078 = vpop.permute.xlu0 %1077
      %1079 = vrot.lane.b32.xlu0 %v1060, 127
      %v1080 = vpop.permute.xlu0 %1079
      %1081 = vrot.lane.b32.xlu0 %v1061, 127
      %v1082 = vpop.permute.xlu0 %1081
      %1083 = vrot.lane.b32.xlu0 %v1062, 127
      %v1084 = vpop.permute.xlu0 %1083
      %1085 = vrot.lane.b32.xlu0 %v1063, 127
      %v1086 = vpop.permute.xlu0 %1085
      %1087 = vrot.lane.b32.xlu0 %v1064, 127
      %v1088 = vpop.permute.xlu0 %1087
      %1097 = vrot.lane.b32.xlu0 %v1057, 113
      %v1098 = vpop.permute.xlu0 %1097
      %1099 = vrot.lane.b32.xlu0 %v1058, 113
      %v1100 = vpop.permute.xlu0 %1099
      %1101 = vrot.lane.b32.xlu0 %v1059, 113
      %v1102 = vpop.permute.xlu0 %1101
      %1103 = vrot.lane.b32.xlu0 %v1060, 113
      %v1104 = vpop.permute.xlu0 %1103
      %1105 = vrot.lane.b32.xlu0 %v1061, 113
      %v1106 = vpop.permute.xlu0 %1105
      %1107 = vrot.lane.b32.xlu0 %v1062, 113
      %v1108 = vpop.permute.xlu0 %1107
      %1109 = vrot.lane.b32.xlu0 %v1063, 113
      %v1110 = vpop.permute.xlu0 %1109
      %1111 = vrot.lane.b32.xlu0 %v1064, 113
      %v1112 = vpop.permute.xlu0 %1111
      %v1121 = vsel %vm308, %v1074, %v1098
      %v1122 = vsel %vm308, %v1076, %v1100
      %v1123 = vsel %vm308, %v1078, %v1102
      %v1124 = vsel %vm308, %v1080, %v1104
      %v1125 = vsel %vm308, %v1082, %v1106
      %v1126 = vsel %vm308, %v1084, %v1108
      %v1127 = vsel %vm308, %v1086, %v1110
      %v1128 = vsel %vm308, %v1088, %v1112
      %v1129 = vadd.f32 %v1009, %v1121
      %v1130 = vadd.f32 %v1010, %v1122
      %v1131 = vadd.f32 %v1011, %v1123
      %v1132 = vadd.f32 %v1012, %v1124
      %v1133 = vadd.f32 %v1013, %v1125
      %v1134 = vadd.f32 %v1014, %v1126
      %v1135 = vadd.f32 %v1015, %v1127
      %v1136 = vadd.f32 %v1016, %v1128
      %v1137 = vsel %vm309, %v1098, %v1074
      %v1138 = vsel %vm309, %v1100, %v1076
      %v1139 = vsel %vm309, %v1102, %v1078
      %v1140 = vsel %vm309, %v1104, %v1080
      %v1141 = vsel %vm309, %v1106, %v1082
      %v1142 = vsel %vm309, %v1108, %v1084
      %v1143 = vsel %vm309, %v1110, %v1086
      %v1144 = vsel %vm309, %v1112, %v1088
      %v1145 = vadd.f32 %v1129, %v1137
      %v1146 = vadd.f32 %v1130, %v1138
      %v1147 = vadd.f32 %v1131, %v1139
      %v1148 = vadd.f32 %v1132, %v1140
      %v1149 = vadd.f32 %v1133, %v1141
      %v1150 = vadd.f32 %v1134, %v1142
      %v1151 = vadd.f32 %v1135, %v1143
      %v1152 = vadd.f32 %v1136, %v1144
      %v1153 = vmul.f32 %v1145, 0.11111111
      %v1154 = vmul.f32 %v1146, 0.11111111
      %v1155 = vmul.f32 %v1147, 0.11111111
      %v1156 = vmul.f32 %v1148, 0.11111111
      %v1157 = vmul.f32 %v1149, 0.11111111
      %v1158 = vmul.f32 %v1150, 0.11111111
      %v1159 = vmul.f32 %v1151, 0.11111111
      %v1160 = vmul.f32 %v1152, 0.11111111
      %v1161 = vmul.f32 %v169, %v177
      %v1162 = vmul.f32 %v170, %v178
      %v1163 = vmul.f32 %v171, %v179
      %v1164 = vmul.f32 %v172, %v180
      %v1165 = vmul.f32 %v173, %v181
      %v1166 = vmul.f32 %v174, %v182
      %v1167 = vmul.f32 %v175, %v183
      %v1168 = vmul.f32 %v176, %v184
      %v1169 = vrot.slane %v1161, 7
      %v1170 = vrot.slane %v1162, 7
      %v1171 = vrot.slane %v1163, 7
      %v1172 = vrot.slane %v1164, 7
      %v1173 = vrot.slane %v1165, 7
      %v1174 = vrot.slane %v1166, 7
      %v1175 = vrot.slane %v1167, 7
      %v1176 = vrot.slane %v1168, 7
      %v1177 = vsel %vm318, %v1175, %v1176
      %v1178 = vsel %vm318, %v1174, %v1175
      %v1179 = vsel %vm318, %v1173, %v1174
      %v1180 = vsel %vm318, %v1172, %v1173
      %v1181 = vsel %vm318, %v1171, %v1172
      %v1182 = vsel %vm318, %v1170, %v1171
      %v1183 = vsel %vm318, %v1169, %v1170
      %v1184 = vsel %vm318, %v1176, %v1169
      %v1185 = vrot.slane %v1161, 1
      %v1186 = vrot.slane %v1162, 1
      %v1187 = vrot.slane %v1163, 1
      %v1188 = vrot.slane %v1164, 1
      %v1189 = vrot.slane %v1165, 1
      %v1190 = vrot.slane %v1166, 1
      %v1191 = vrot.slane %v1167, 1
      %v1192 = vrot.slane %v1168, 1
      %v1193 = vsel %vm335, %v1191, %v1192
      %v1194 = vsel %vm335, %v1190, %v1191
      %v1195 = vsel %vm335, %v1189, %v1190
      %v1196 = vsel %vm335, %v1188, %v1189
      %v1197 = vsel %vm335, %v1187, %v1188
      %v1198 = vsel %vm335, %v1186, %v1187
      %v1199 = vsel %vm335, %v1185, %v1186
      %v1200 = vsel %vm335, %v1192, %v1185
      %v1201 = vsel %vm292, %v1199, %v1184
      %v1202 = vsel %vm293, %v1198, %v1183
      %v1203 = vsel %vm294, %v1197, %v1182
      %v1204 = vsel %vm295, %v1196, %v1181
      %v1205 = vsel %vm296, %v1195, %v1180
      %v1206 = vsel %vm297, %v1194, %v1179
      %v1207 = vsel %vm298, %v1193, %v1178
      %v1208 = vsel %vm299, %v1200, %v1177
      %v1209 = vadd.f32 %v1161, %v1201
      %v1210 = vadd.f32 %v1162, %v1202
      %v1211 = vadd.f32 %v1163, %v1203
      %v1212 = vadd.f32 %v1164, %v1204
      %v1213 = vadd.f32 %v1165, %v1205
      %v1214 = vadd.f32 %v1166, %v1206
      %v1215 = vadd.f32 %v1167, %v1207
      %v1216 = vadd.f32 %v1168, %v1208
      %v1217 = vsel %vm300, %v1184, %v1199
      %v1218 = vsel %vm301, %v1183, %v1198
      %v1219 = vsel %vm302, %v1182, %v1197
      %v1220 = vsel %vm303, %v1181, %v1196
      %v1221 = vsel %vm304, %v1180, %v1195
      %v1222 = vsel %vm305, %v1179, %v1194
      %v1223 = vsel %vm306, %v1178, %v1193
      %v1224 = vsel %vm307, %v1177, %v1200
      %v1225 = vadd.f32 %v1209, %v1217
      %v1226 = vadd.f32 %v1210, %v1218
      %v1227 = vadd.f32 %v1211, %v1219
      %v1228 = vadd.f32 %v1212, %v1220
      %v1229 = vadd.f32 %v1213, %v1221
      %v1230 = vadd.f32 %v1214, %v1222
      %v1231 = vadd.f32 %v1215, %v1223
      %v1232 = vadd.f32 %v1216, %v1224
      %1233 = vrot.lane.b32.xlu0 %v1225, 16
      %v1234 = vpop.permute.xlu0 %1233
      %v1235 = vsel %vm376, %v1234, %v1225
      %1236 = vrot.lane.b32.xlu0 %v1226, 16
      %v1237 = vpop.permute.xlu0 %1236
      %v1238 = vsel %vm376, %v1237, %v1226
      %1239 = vrot.lane.b32.xlu0 %v1227, 16
      %v1240 = vpop.permute.xlu0 %1239
      %v1241 = vsel %vm376, %v1240, %v1227
      %1242 = vrot.lane.b32.xlu0 %v1228, 16
      %v1243 = vpop.permute.xlu0 %1242
      %v1244 = vsel %vm376, %v1243, %v1228
      %1245 = vrot.lane.b32.xlu0 %v1229, 16
      %v1246 = vpop.permute.xlu0 %1245
      %v1247 = vsel %vm376, %v1246, %v1229
      %1248 = vrot.lane.b32.xlu0 %v1230, 16
      %v1249 = vpop.permute.xlu0 %1248
      %v1250 = vsel %vm376, %v1249, %v1230
      %1251 = vrot.lane.b32.xlu0 %v1231, 16
      %v1252 = vpop.permute.xlu0 %1251
      %v1253 = vsel %vm376, %v1252, %v1231
      %1254 = vrot.lane.b32.xlu0 %v1232, 16
      %v1255 = vpop.permute.xlu0 %1254
      %v1256 = vsel %vm376, %v1255, %v1232
      %1257 = vrot.lane.b32.xlu0 %v1235, 16
      %v1258 = vpop.permute.xlu0 %1257
      %1259 = vrot.lane.b32.xlu0 %v1238, 16
      %v1260 = vpop.permute.xlu0 %1259
      %1261 = vrot.lane.b32.xlu0 %v1241, 16
      %v1262 = vpop.permute.xlu0 %1261
      %1263 = vrot.lane.b32.xlu0 %v1244, 16
      %v1264 = vpop.permute.xlu0 %1263
      %1265 = vrot.lane.b32.xlu0 %v1247, 16
      %v1266 = vpop.permute.xlu0 %1265
      %1267 = vrot.lane.b32.xlu0 %v1250, 16
      %v1268 = vpop.permute.xlu0 %1267
      %1269 = vrot.lane.b32.xlu0 %v1253, 16
      %v1270 = vpop.permute.xlu0 %1269
      %1271 = vrot.lane.b32.xlu0 %v1256, 16
      %v1272 = vpop.permute.xlu0 %1271
      %v1273 = vsel %vm376, %v1258, %v1225
      %v1274 = vsel %vm376, %v1260, %v1226
      %v1275 = vsel %vm376, %v1262, %v1227
      %v1276 = vsel %vm376, %v1264, %v1228
      %v1277 = vsel %vm376, %v1266, %v1229
      %v1278 = vsel %vm376, %v1268, %v1230
      %v1279 = vsel %vm376, %v1270, %v1231
      %v1280 = vsel %vm376, %v1272, %v1232
      %1289 = vrot.lane.b32.xlu0 %v1273, 127
      %v1290 = vpop.permute.xlu0 %1289
      %1291 = vrot.lane.b32.xlu0 %v1274, 127
      %v1292 = vpop.permute.xlu0 %1291
      %1293 = vrot.lane.b32.xlu0 %v1275, 127
      %v1294 = vpop.permute.xlu0 %1293
      %1295 = vrot.lane.b32.xlu0 %v1276, 127
      %v1296 = vpop.permute.xlu0 %1295
      %1297 = vrot.lane.b32.xlu0 %v1277, 127
      %v1298 = vpop.permute.xlu0 %1297
      %1299 = vrot.lane.b32.xlu0 %v1278, 127
      %v1300 = vpop.permute.xlu0 %1299
      %1301 = vrot.lane.b32.xlu0 %v1279, 127
      %v1302 = vpop.permute.xlu0 %1301
      %1303 = vrot.lane.b32.xlu0 %v1280, 127
      %v1304 = vpop.permute.xlu0 %1303
      %1313 = vrot.lane.b32.xlu0 %v1273, 113
      %v1314 = vpop.permute.xlu0 %1313
      %1315 = vrot.lane.b32.xlu0 %v1274, 113
      %v1316 = vpop.permute.xlu0 %1315
      %1317 = vrot.lane.b32.xlu0 %v1275, 113
      %v1318 = vpop.permute.xlu0 %1317
      %1319 = vrot.lane.b32.xlu0 %v1276, 113
      %v1320 = vpop.permute.xlu0 %1319
      %1321 = vrot.lane.b32.xlu0 %v1277, 113
      %v1322 = vpop.permute.xlu0 %1321
      %1323 = vrot.lane.b32.xlu0 %v1278, 113
      %v1324 = vpop.permute.xlu0 %1323
      %1325 = vrot.lane.b32.xlu0 %v1279, 113
      %v1326 = vpop.permute.xlu0 %1325
      %1327 = vrot.lane.b32.xlu0 %v1280, 113
      %v1328 = vpop.permute.xlu0 %1327
      %v1337 = vsel %vm308, %v1290, %v1314
      %v1338 = vsel %vm308, %v1292, %v1316
      %v1339 = vsel %vm308, %v1294, %v1318
      %v1340 = vsel %vm308, %v1296, %v1320
      %v1341 = vsel %vm308, %v1298, %v1322
      %v1342 = vsel %vm308, %v1300, %v1324
      %v1343 = vsel %vm308, %v1302, %v1326
      %v1344 = vsel %vm308, %v1304, %v1328
      %v1345 = vadd.f32 %v1225, %v1337
      %v1346 = vadd.f32 %v1226, %v1338
      %v1347 = vadd.f32 %v1227, %v1339
      %v1348 = vadd.f32 %v1228, %v1340
      %v1349 = vadd.f32 %v1229, %v1341
      %v1350 = vadd.f32 %v1230, %v1342
      %v1351 = vadd.f32 %v1231, %v1343
      %v1352 = vadd.f32 %v1232, %v1344
      %v1353 = vsel %vm309, %v1314, %v1290
      %v1354 = vsel %vm309, %v1316, %v1292
      %v1355 = vsel %vm309, %v1318, %v1294
      %v1356 = vsel %vm309, %v1320, %v1296
      %v1357 = vsel %vm309, %v1322, %v1298
      %v1358 = vsel %vm309, %v1324, %v1300
      %v1359 = vsel %vm309, %v1326, %v1302
      %v1360 = vsel %vm309, %v1328, %v1304
      %v1361 = vadd.f32 %v1345, %v1353
      %v1362 = vadd.f32 %v1346, %v1354
      %v1363 = vadd.f32 %v1347, %v1355
      %v1364 = vadd.f32 %v1348, %v1356
      %v1365 = vadd.f32 %v1349, %v1357
      %v1366 = vadd.f32 %v1350, %v1358
      %v1367 = vadd.f32 %v1351, %v1359
      %v1368 = vadd.f32 %v1352, %v1360
      %v1369 = vmul.f32 %v1361, 0.11111111
      %v1370 = vmul.f32 %v1362, 0.11111111
      %v1371 = vmul.f32 %v1363, 0.11111111
      %v1372 = vmul.f32 %v1364, 0.11111111
      %v1373 = vmul.f32 %v1365, 0.11111111
      %v1374 = vmul.f32 %v1366, 0.11111111
      %v1375 = vmul.f32 %v1367, 0.11111111
      %v1376 = vmul.f32 %v1368, 0.11111111
      %v1377 = vmul.f32 %v513, %v513
      %v1378 = vmul.f32 %v514, %v514
      %v1379 = vmul.f32 %v515, %v515
      %v1380 = vmul.f32 %v516, %v516
      %v1381 = vmul.f32 %v517, %v517
      %v1382 = vmul.f32 %v518, %v518
      %v1383 = vmul.f32 %v519, %v519
      %v1384 = vmul.f32 %v520, %v520
      %v1385 = vmul.f32 %v721, %v721
      %v1386 = vmul.f32 %v722, %v722
      %v1387 = vmul.f32 %v723, %v723
      %v1388 = vmul.f32 %v724, %v724
      %v1389 = vmul.f32 %v725, %v725
      %v1390 = vmul.f32 %v726, %v726
      %v1391 = vmul.f32 %v727, %v727
      %v1392 = vmul.f32 %v728, %v728
      %v1393 = vmul.f32 %v513, %v721
      %v1394 = vmul.f32 %v514, %v722
      %v1395 = vmul.f32 %v515, %v723
      %v1396 = vmul.f32 %v516, %v724
      %v1397 = vmul.f32 %v517, %v725
      %v1398 = vmul.f32 %v518, %v726
      %v1399 = vmul.f32 %v519, %v727
      %v1400 = vmul.f32 %v520, %v728
      %v1401 = vsub.f32 %v937, %v1377
      %v1402 = vsub.f32 %v938, %v1378
      %v1403 = vsub.f32 %v939, %v1379
      %v1404 = vsub.f32 %v940, %v1380
      %v1405 = vsub.f32 %v941, %v1381
      %v1406 = vsub.f32 %v942, %v1382
      %v1407 = vsub.f32 %v943, %v1383
      %v1408 = vsub.f32 %v944, %v1384
      %v1409 = vsub.f32 %v1153, %v1385
      %v1410 = vsub.f32 %v1154, %v1386
      %v1411 = vsub.f32 %v1155, %v1387
      %v1412 = vsub.f32 %v1156, %v1388
      %v1413 = vsub.f32 %v1157, %v1389
      %v1414 = vsub.f32 %v1158, %v1390
      %v1415 = vsub.f32 %v1159, %v1391
      %v1416 = vsub.f32 %v1160, %v1392
      %v1417 = vsub.f32 %v1369, %v1393
      %v1418 = vsub.f32 %v1370, %v1394
      %v1419 = vsub.f32 %v1371, %v1395
      %v1420 = vsub.f32 %v1372, %v1396
      %v1421 = vsub.f32 %v1373, %v1397
      %v1422 = vsub.f32 %v1374, %v1398
      %v1423 = vsub.f32 %v1375, %v1399
      %v1424 = vsub.f32 %v1376, %v1400
      %v1425 = vmul.f32 %v1393, 2.0
      %v1426 = vmul.f32 %v1394, 2.0
      %v1427 = vmul.f32 %v1395, 2.0
      %v1428 = vmul.f32 %v1396, 2.0
      %v1429 = vmul.f32 %v1397, 2.0
      %v1430 = vmul.f32 %v1398, 2.0
      %v1431 = vmul.f32 %v1399, 2.0
      %v1432 = vmul.f32 %v1400, 2.0
      %v1433 = vadd.f32 %v1425, 0.0001
      %v1434 = vadd.f32 %v1426, 0.0001
      %v1435 = vadd.f32 %v1427, 0.0001
      %v1436 = vadd.f32 %v1428, 0.0001
      %v1437 = vadd.f32 %v1429, 0.0001
      %v1438 = vadd.f32 %v1430, 0.0001
      %v1439 = vadd.f32 %v1431, 0.0001
      %v1440 = vadd.f32 %v1432, 0.0001
      %v1441 = vmul.f32 %v1417, 2.0
      %v1442 = vmul.f32 %v1418, 2.0
      %v1443 = vmul.f32 %v1419, 2.0
      %v1444 = vmul.f32 %v1420, 2.0
      %v1445 = vmul.f32 %v1421, 2.0
      %v1446 = vmul.f32 %v1422, 2.0
      %v1447 = vmul.f32 %v1423, 2.0
      %v1448 = vmul.f32 %v1424, 2.0
      %v1449 = vadd.f32 %v1441, 0.0009
      %v1450 = vadd.f32 %v1442, 0.0009
      %v1451 = vadd.f32 %v1443, 0.0009
      %v1452 = vadd.f32 %v1444, 0.0009
      %v1453 = vadd.f32 %v1445, 0.0009
      %v1454 = vadd.f32 %v1446, 0.0009
      %v1455 = vadd.f32 %v1447, 0.0009
      %v1456 = vadd.f32 %v1448, 0.0009
      %v1457 = vmul.f32 %v1433, %v1449
      %v1458 = vmul.f32 %v1434, %v1450
      %v1459 = vmul.f32 %v1435, %v1451
      %v1460 = vmul.f32 %v1436, %v1452
      %v1461 = vmul.f32 %v1437, %v1453
      %v1462 = vmul.f32 %v1438, %v1454
      %v1463 = vmul.f32 %v1439, %v1455
      %v1464 = vmul.f32 %v1440, %v1456
      %v1465 = vadd.f32 %v1377, %v1385
      %v1466 = vadd.f32 %v1378, %v1386
      %v1467 = vadd.f32 %v1379, %v1387
      %v1468 = vadd.f32 %v1380, %v1388
      %v1469 = vadd.f32 %v1381, %v1389
      %v1470 = vadd.f32 %v1382, %v1390
      %v1471 = vadd.f32 %v1383, %v1391
      %v1472 = vadd.f32 %v1384, %v1392
      %v1473 = vadd.f32 %v1465, 0.0001
      %v1474 = vadd.f32 %v1466, 0.0001
      %v1475 = vadd.f32 %v1467, 0.0001
      %v1476 = vadd.f32 %v1468, 0.0001
      %v1477 = vadd.f32 %v1469, 0.0001
      %v1478 = vadd.f32 %v1470, 0.0001
      %v1479 = vadd.f32 %v1471, 0.0001
      %v1480 = vadd.f32 %v1472, 0.0001
      %v1481 = vadd.f32 %v1401, %v1409
      %v1482 = vadd.f32 %v1402, %v1410
      %v1483 = vadd.f32 %v1403, %v1411
      %v1484 = vadd.f32 %v1404, %v1412
      %v1485 = vadd.f32 %v1405, %v1413
      %v1486 = vadd.f32 %v1406, %v1414
      %v1487 = vadd.f32 %v1407, %v1415
      %v1488 = vadd.f32 %v1408, %v1416
      %v1489 = vadd.f32 %v1481, 0.0009
      %v1490 = vadd.f32 %v1482, 0.0009
      %v1491 = vadd.f32 %v1483, 0.0009
      %v1492 = vadd.f32 %v1484, 0.0009
      %v1493 = vadd.f32 %v1485, 0.0009
      %v1494 = vadd.f32 %v1486, 0.0009
      %v1495 = vadd.f32 %v1487, 0.0009
      %v1496 = vadd.f32 %v1488, 0.0009
      %v1497 = vmul.f32 %v1473, %v1489
      %v1498 = vmul.f32 %v1474, %v1490
      %v1499 = vmul.f32 %v1475, %v1491
      %v1500 = vmul.f32 %v1476, %v1492
      %v1501 = vmul.f32 %v1477, %v1493
      %v1502 = vmul.f32 %v1478, %v1494
      %v1503 = vmul.f32 %v1479, %v1495
      %v1504 = vmul.f32 %v1480, %v1496
      %v1505 = vrcp.pop %v1497
      %v1506 = vrcp.pop %v1498
      %v1507 = vrcp.pop %v1499
      %v1508 = vrcp.pop %v1500
      %v1509 = vrcp.pop %v1501
      %v1510 = vrcp.pop %v1502
      %v1511 = vrcp.pop %v1503
      %v1512 = vrcp.pop %v1504
      %v1513 = vmul.f32 %v1457, %v1505
      %v1514 = vmul.f32 %v1458, %v1506
      %v1515 = vmul.f32 %v1459, %v1507
      %v1516 = vmul.f32 %v1460, %v1508
      %v1517 = vmul.f32 %v1461, %v1509
      %v1518 = vmul.f32 %v1462, %v1510
      %v1519 = vmul.f32 %v1463, %v1511
      %v1520 = vmul.f32 %v1464, %v1512
      %v1521 = vsub.f32 1.0, %v1513
      %v1522 = vsub.f32 1.0, %v1514
      %v1523 = vsub.f32 1.0, %v1515
      %v1524 = vsub.f32 1.0, %v1516
      %v1525 = vsub.f32 1.0, %v1517
      %v1526 = vsub.f32 1.0, %v1518
      %v1527 = vsub.f32 1.0, %v1519
      %v1528 = vsub.f32 1.0, %v1520
      %v1529 = vmul.f32 %v1521, 0.5
      %v1530 = vmul.f32 %v1522, 0.5
      %v1531 = vmul.f32 %v1523, 0.5
      %v1532 = vmul.f32 %v1524, 0.5
      %v1533 = vmul.f32 %v1525, 0.5
      %v1534 = vmul.f32 %v1526, 0.5
      %v1535 = vmul.f32 %v1527, 0.5
      %v1536 = vmul.f32 %v1528, 0.5
      %v1537 = vmax.f32 %v1529, 0.0
      %v1538 = vmax.f32 %v1530, 0.0
      %v1539 = vmax.f32 %v1531, 0.0
      %v1540 = vmax.f32 %v1532, 0.0
      %v1541 = vmax.f32 %v1533, 0.0
      %v1542 = vmax.f32 %v1534, 0.0
      %v1543 = vmax.f32 %v1535, 0.0
      %v1544 = vmax.f32 %v1536, 0.0
      %v1545 = vmin.f32 %v1537, 1.0
      %v1546 = vmin.f32 %v1538, 1.0
      %v1547 = vmin.f32 %v1539, 1.0
      %v1548 = vmin.f32 %v1540, 1.0
      %v1549 = vmin.f32 %v1541, 1.0
      %v1550 = vmin.f32 %v1542, 1.0
      %v1551 = vmin.f32 %v1543, 1.0
      %v1552 = vmin.f32 %v1544, 1.0
      %vm1553 = vcmask 130048
      %1554 = vst.msk [vmem:[%s167] sm:$0xff] %vm1553, %v1545
      %1555 = vst.msk [vmem:[%s167 + $0x8] sm:$0xff] %vm1553, %v1546
      %1556 = vst.msk [vmem:[%s167 + $0x10] sm:$0xff] %vm1553, %v1547
      %1557 = vst.msk [vmem:[%s167 + $0x18] sm:$0xff] %vm1553, %v1548
      %1558 = vst.msk [vmem:[%s167 + $0x20] sm:$0xff] %vm1553, %v1549
      %1559 = vst.msk [vmem:[%s167 + $0x28] sm:$0xff] %vm1553, %v1550
      %1560 = vst.msk [vmem:[%s167 + $0x30] sm:$0xff] %vm1553, %v1551
      %1561 = vst.msk [vmem:[%s167 + $0x38] sm:$0xff] %vm1553, %v1552
      %s1562 = smul.u32 8, %s13
      %p1563 = scmp.lt.s32.totalorder %s1562, 15
      %s1564 = scalar_select %p1563, %s1562, 15
      %s1565 = smul.addr %s1564, 8
      %s1566 = scalar_lea.vmem %s2, %s1565
      // Predicated region
      $region29: #{tpu_custom_call.1} parent=27 // pred_check
        %p1567 = pneg %p83
      $region30: #{tpu_custom_call.1} parent=27 // pred_check_branch
        %1569 = sbr.rel (%p1567) target = $region32
      $region31: #{tpu_custom_call.1} parent=27 // pred_region
        %s1570 = smul.u32 8, %s13
      $region32: #{tpu_custom_call.1} parent=27 // pred_fallthru
        _
    $region28: #{tpu_custom_call.1} parent=5 // pred_fallthru
      _
    %p1571 = scmp.le.s32.totalorder 2, %s8
    // Predicated region
    $region33: #{tpu_custom_call.1} parent=5 // pred_check
      %p1572 = pneg %p1571
    $region34: #{tpu_custom_call.1} parent=5 // pred_check_branch
      %1574 = sbr.rel (%p1572) target = $region36
    $region35: #{tpu_custom_call.1} parent=5 // pred_region
      %s1575 = ssub.s32 %s8, 2
      // Predicated region
      $region37: #{tpu_custom_call.1} parent=35 // pred_check
        %p1576 = pneg %p89
      $region38: #{tpu_custom_call.1} parent=35 // pred_check_branch
        %1578 = sbr.rel (%p1576) target = $region40
      $region39: #{tpu_custom_call.1} parent=35 // pred_region
        %s1579 = smul.u32 8, %s14
        %p1580 = scmp.lt.s32.totalorder %s1579, 15
        %s1581 = scalar_select %p1580, %s1579, 15
        %s1582 = smul.addr %s1581, 8
        %s1583 = scalar_lea.vmem %s2, %s1582
      $region40: #{tpu_custom_call.1} parent=35 // pred_fallthru
        _
    $region36: #{tpu_custom_call.1} parent=5 // pred_fallthru
      _
  $region6: #{tpu_custom_call.1} parent=0 // loop_footer
    %s12 = sadd.s32 1, %s8
  $region7: #{tpu_custom_call.1} parent=0 // loop_footer_branch
    %7 = sbr.rel target = $region3
  $region8: #{tpu_custom_call.1} parent=0 // loop_exit
    _

</llo_original>
